<compile_context>
chip_gen: v5e
topology: v5e:2x2
jax: 0.10.0
libtpu: 0.0.40
codegen_flags: <defaults>
</compile_context>

<pallas_src>
import math
from functools import partial

import jax
import jax.numpy as jnp
from jax.experimental import pallas as pl
from jax.experimental.pallas import tpu as pltpu


# ---------------------------------------------------------------------------
# Fused forward kernel (one grid step == one batch element)
# ---------------------------------------------------------------------------

def _make_fused_kernel(n_nodes, num_layers, k_nodes):
    f32 = jnp.float32
    bf16 = jnp.bfloat16

    def kernel(a_ref, x_ref, w1_ref, wr_ref, ball_ref, tw_ref, fw_ref,
               l1w_ref, l1b_ref, l2w_ref, l2b_ref, o_ref):
        # ----- GCN stack (per-batch) ---------------------------------------
        h = x_ref[0]                                     # (N, Fin) bf16

        # Running dot products of the (never materialized) interleaved concat.
        s_col = jnp.zeros((n_nodes, 1), f32)             # x_cat . (topk_w / ||topk_w||)
        v_col = jnp.zeros((n_nodes, 1), f32)             # x_cat . fc_w

        for l in range(num_layers):
            w_l = w1_ref[...] if l == 0 else wr_ref[l - 1]                 # bf16
            b_l = ball_ref[l:l + 1, :]                                     # (1, H) f32
            hw = jnp.dot(h.astype(bf16), w_l, preferred_element_type=f32)  # (N, H)
            h = jnp.dot(a_ref[...], hw.astype(bf16),
                        preferred_element_type=f32) + b_l                  # aggregate
            h = jnp.maximum(h, 0.0)                                        # f32
            # width-1 projections as VPU multiply + lane reduction (no MXU, no concat)
            s_col = s_col + jnp.sum(h * tw_ref[l:l + 1, :], axis=1, keepdims=True)
            v_col = v_col + jnp.sum(h * fw_ref[l:l + 1, :], axis=1, keepdims=True)

        # ----- TopKPooling (per-batch rank + one-hot scatter) ---------------
        score = jnp.tanh(s_col)                          # (N, 1), ||w|| folded in
        vs = v_col * score                               # per-node fc projection of x_pool

        score_row = jnp.transpose(score)                 # (1, N) — tiny XLU transpose
        ri = jax.lax.broadcasted_iota(jnp.int32, (n_nodes, 1), 0)   # (N, 1)
        ci = jax.lax.broadcasted_iota(jnp.int32, (1, n_nodes), 1)   # (1, N)
        # node j "beats" node i: higher score, or equal score with lower index.
        beats = (score_row > score) | ((score_row == score) & (ci < ri))   # (N, N)
        rank = jnp.sum(beats.astype(f32), axis=1, keepdims=True)           # (N, 1)

        # One-hot scatter of v*score into its sorted slot; ranks >= k are dropped.
        slot = jax.lax.broadcasted_iota(jnp.int32, (1, k_nodes), 1).astype(f32)
        pooled = (rank == slot).astype(f32) * vs          # (N, k)
        x_fc = jnp.sum(pooled, axis=0, keepdims=True)     # (1, k) sublane reduce

        # ----- MLP head (fc bias already folded into lin1 bias) -------------
        y = jnp.dot(x_fc, l1w_ref[...], preferred_element_type=f32) + l1b_ref[...]
        y = jnp.maximum(y, 0.0)                           # dropout(p=0.5) == identity (eval)
        z = jnp.dot(y, l2w_ref[...], preferred_element_type=f32) + l2b_ref[...]
        z = z - jnp.max(z, axis=-1, keepdims=True)
        z = z - jnp.log(jnp.sum(jnp.exp(z), axis=-1, keepdims=True))
        o_ref[0] = z                                      # (1, n_classes)

    return kernel


# ---------------------------------------------------------------------------
# Wrapper
# ---------------------------------------------------------------------------

def gcn_model_w_topk_forward(params, a_hat, x, batch, *, num_layers, hidden_gcn):
    """x: (bs, n_nodes, n_features) f32; a_hat: (n_nodes, n_nodes) normalized adjacency."""
    del batch  # unused (signature parity with the PyTorch forward)
    bs, n_nodes, n_feat = x.shape
    k_nodes = int(math.ceil(0.5 * n_nodes))
    hidden_fc = params["lin1_w"].shape[1]
    n_classes = params["lin2_w"].shape[1]

    # MXU-facing operands in bf16 (accumulation stays f32 inside the kernel).
    a_bf = a_hat.astype(jnp.bfloat16)                                      # (N, N)
    x_bf = x.astype(jnp.bfloat16)                                          # (bs, N, Fin)
    w1_bf = params["conv1_w"].astype(jnp.bfloat16)                         # (Fin, H)
    if num_layers > 1:
        wrest_bf = jnp.stack(params["convs_w"], axis=0).astype(jnp.bfloat16)  # (L-1,H,H)
    else:
        wrest_bf = jnp.zeros((1, hidden_gcn, hidden_gcn), jnp.bfloat16)    # unused

    # Re-pack concat-consuming weights so the interleaved concat
    # (feature index = h * L + l) is never materialized:
    #   x_cat . w == sum_l h_l . w.reshape(hidden, L)[:, l]
    tw = params["topk_w"]
    tw_t = tw.reshape(hidden_gcn, num_layers).T / jnp.linalg.norm(tw)      # (L, H)
    fw_t = params["fc_w"][:, 0].reshape(hidden_gcn, num_layers).T          # (L, H)

    # fc bias is a constant added to every pooled slot; fold it exactly into lin1:
    #   relu((x + fc_b) @ W1 + b1) == relu(x @ W1 + (b1 + fc_b * W1.sum(0)))
    l1b_eff = params["lin1_b"] + params["fc_b"][0] * params["lin1_w"].sum(axis=0)

    ball = jnp.concatenate([params["conv1_b"][None, :]]
                           + [b[None, :] for b in params["convs_b"]], axis=0)  # (L, H)

    operands = (
        a_bf, x_bf, w1_bf, wrest_bf, ball, tw_t, fw_t,
        params["lin1_w"], l1b_eff.reshape(1, hidden_fc),
        params["lin2_w"], params["lin2_b"].reshape(1, n_classes),
    )

    def _resident(arr):
        # Whole array, same block for every grid step -> fetched once, stays in VMEM.
        nd = arr.ndim
        return pl.BlockSpec(arr.shape, lambda b, nd=nd: (0,) * nd)

    in_specs = [
        _resident(a_bf),                                               # a_hat
        pl.BlockSpec((1, n_nodes, n_feat), lambda b: (b, 0, 0)),       # x (per batch)
    ] + [_resident(op) for op in operands[2:]]

    kernel = _make_fused_kernel(n_nodes, num_layers, k_nodes)
    out = pl.pallas_call(
        kernel,
        out_shape=jax.ShapeDtypeStruct((bs, 1, n_classes), jnp.float32),
        grid=(bs,),
        in_specs=in_specs,
        out_specs=pl.BlockSpec((1, 1, n_classes), lambda b: (b, 0, 0)),
        compiler_params=pltpu.CompilerParams(
            dimension_semantics=("parallel",),        # batch split across TCs on v7x
            vmem_limit_bytes=32 * 1024 * 1024,
        ),
    )(*operands)
    return out.reshape(bs, n_classes)


# ---------------------------------------------------------------------------
# Parameters / demo graph
# ---------------------------------------------------------------------------

def init_params(key, n_features, n_classes, num_layers, hidden_gcn, hidden_fc, n_genes):
    keys = jax.random.split(key, 16)
    f_cat = num_layers * hidden_gcn
    k_nodes = int(math.ceil(0.5 * n_genes))

    def glorot(k_, shape):
        fan_in, fan_out = shape[0], shape[1]
        lim = math.sqrt(6.0 / (fan_in + fan_out))
        return jax.random.uniform(k_, shape, jnp.float32, -lim, lim)

    return {
        "conv1_w": glorot(keys[0], (n_features, hidden_gcn)),
        "conv1_b": jnp.zeros((hidden_gcn,), jnp.float32),
        "convs_w": [glorot(keys[1 + i], (hidden_gcn, hidden_gcn))
                    for i in range(num_layers - 1)],
        "convs_b": [jnp.zeros((hidden_gcn,), jnp.float32)
                    for _ in range(num_layers - 1)],
        "topk_w": jax.random.uniform(keys[8], (f_cat,), jnp.float32, -1.0, 1.0),
        "fc_w": glorot(keys[9], (f_cat, 1)),
        "fc_b": jnp.zeros((1,), jnp.float32),
        "lin1_w": glorot(keys[10], (k_nodes, hidden_fc)),
        "lin1_b": jnp.zeros((hidden_fc,), jnp.float32),
        "lin2_w": glorot(keys[11], (hidden_fc, n_classes)),
        "lin2_b": jnp.zeros((n_classes,), jnp.float32),
    }


def build_normalized_adj(n_nodes):
    """Dense GCN-normalized adjacency D^-1/2 (A + I) D^-1/2 for a ring graph."""
    src = jnp.arange(n_nodes)
    dst = (src + 1) % n_nodes
    adj = jnp.zeros((n_nodes, n_nodes), jnp.float32)
    adj = adj.at[dst, src].set(1.0).at[src, dst].set(1.0)
    adj = jnp.maximum(adj, jnp.eye(n_nodes, dtype=jnp.float32))   # self loops
    deg = adj.sum(axis=1)
    dinv = 1.0 / jnp.sqrt(deg)
    return dinv[:, None] * adj * dinv[None, :]


# ---------------------------------------------------------------------------
# Demo
# ---------------------------------------------------------------------------

if __name__ == "__main__":
    BS = 2
    N_GENES = 64           # nodes per graph
    N_FEATURES = 8
    N_CLASSES = 4
    NUM_LAYERS = 3
    HIDDEN_GCN = 16
    HIDDEN_FC = 32

    key = jax.random.PRNGKey(0)
    k_param, k_x = jax.random.split(key)

    params = init_params(k_param, N_FEATURES, N_CLASSES, NUM_LAYERS,
                         HIDDEN_GCN, HIDDEN_FC, N_GENES)
    a_hat = build_normalized_adj(N_GENES)
    x = jax.random.normal(k_x, (BS, N_GENES, N_FEATURES), jnp.float32)
    batch = jnp.zeros((BS * N_GENES,), jnp.int32)   # signature parity; unused

    fwd = jax.jit(partial(gcn_model_w_topk_forward,
                          num_layers=NUM_LAYERS, hidden_gcn=HIDDEN_GCN))
    out = jax.block_until_ready(fwd(params, a_hat, x, batch))

    assert out.shape == (BS, N_CLASSES)
    assert bool(jnp.all(jnp.isfinite(out)))
    # log_softmax rows must sum to ~1 in probability space
    assert jnp.allclose(jnp.exp(out).sum(-1), 1.0, atol=1e-4)
    print("KERNEL_OK")
</pallas_src>

<mosaic_0001>
module attributes {stable_mosaic.version = 11 : i64} {
  func.func @kernel(%arg0: i32, %arg1: memref<64x64xbf16, #tpu.memory_space<vmem>>, %arg2: memref<1x64x8xbf16, #tpu.memory_space<vmem>>, %arg3: memref<8x16xbf16, #tpu.memory_space<vmem>>, %arg4: memref<2x16x16xbf16, #tpu.memory_space<vmem>>, %arg5: memref<3x16xf32, #tpu.memory_space<vmem>>, %arg6: memref<3x16xf32, #tpu.memory_space<vmem>>, %arg7: memref<3x16xf32, #tpu.memory_space<vmem>>, %arg8: memref<32x32xf32, #tpu.memory_space<vmem>>, %arg9: memref<1x32xf32, #tpu.memory_space<vmem>>, %arg10: memref<32x4xf32, #tpu.memory_space<vmem>>, %arg11: memref<1x4xf32, #tpu.memory_space<vmem>>, %arg12: memref<1x1x4xf32, #tpu.memory_space<vmem>>) attributes {dimension_semantics = [#tpu.dimension_semantics<parallel>], iteration_bounds = array<i64: 2>, scalar_prefetch = 0 : i64, scratch_operands = 0 : i64, tpu.core_type = #tpu.core_type<tc>, window_params = [{pipeline_mode = #tpu.pipeline_mode<synchronous>, transform_indices = @transform_0, window_bounds = array<i64: 64, 64>}, {transform_indices = @transform_1, window_bounds = array<i64: 1, 64, 8>}, {pipeline_mode = #tpu.pipeline_mode<synchronous>, transform_indices = @transform_2, window_bounds = array<i64: 8, 16>}, {pipeline_mode = #tpu.pipeline_mode<synchronous>, transform_indices = @transform_3, window_bounds = array<i64: 2, 16, 16>}, {pipeline_mode = #tpu.pipeline_mode<synchronous>, transform_indices = @transform_4, window_bounds = array<i64: 3, 16>}, {pipeline_mode = #tpu.pipeline_mode<synchronous>, transform_indices = @transform_5, window_bounds = array<i64: 3, 16>}, {pipeline_mode = #tpu.pipeline_mode<synchronous>, transform_indices = @transform_6, window_bounds = array<i64: 3, 16>}, {pipeline_mode = #tpu.pipeline_mode<synchronous>, transform_indices = @transform_7, window_bounds = array<i64: 32, 32>}, {pipeline_mode = #tpu.pipeline_mode<synchronous>, transform_indices = @transform_8, window_bounds = array<i64: 1, 32>}, {pipeline_mode = #tpu.pipeline_mode<synchronous>, transform_indices = @transform_9, window_bounds = array<i64: 32, 4>}, {pipeline_mode = #tpu.pipeline_mode<synchronous>, transform_indices = @transform_10, window_bounds = array<i64: 1, 4>}, {transform_indices = @transform_11, window_bounds = array<i64: 1, 1, 4>}]} {
    %c0 = arith.constant 0 : index
    %c0_0 = arith.constant 0 : index
    %c0_1 = arith.constant 0 : index
    %0 = vector.load %arg2[%c0, %c0_0, %c0_1] : memref<1x64x8xbf16, #tpu.memory_space<vmem>>, vector<1x64x8xbf16>
    %1 = vector.shape_cast %0 : vector<1x64x8xbf16> to vector<64x8xbf16>
    %cst = arith.constant 0.000000e+00 : f32
    %2 = vector.broadcast %cst : f32 to vector<64x1xf32>
    %cst_2 = arith.constant 0.000000e+00 : f32
    %3 = vector.broadcast %cst_2 : f32 to vector<64x1xf32>
    %c0_3 = arith.constant 0 : index
    %c0_4 = arith.constant 0 : index
    %4 = vector.load %arg3[%c0_3, %c0_4] : memref<8x16xbf16, #tpu.memory_space<vmem>>, vector<8x16xbf16>
    %c0_5 = arith.constant 0 : index
    %c0_6 = arith.constant 0 : index
    %5 = vector.load %arg5[%c0_5, %c0_6] : memref<3x16xf32, #tpu.memory_space<vmem>>, vector<1x16xf32>
    %cst_7 = arith.constant dense<0.000000e+00> : vector<64x16xf32>
    %6 = tpu.matmul %1, %4, %cst_7 {dimension_numbers = #tpu.dot_dimension_numbers<[1], [0], [0], [1], [0, 0, 1, 1], [], []>} : vector<64x8xbf16>, vector<8x16xbf16>, vector<64x16xf32> -> vector<64x16xf32>
    %c0_8 = arith.constant 0 : index
    %c0_9 = arith.constant 0 : index
    %7 = vector.load %arg1[%c0_8, %c0_9] : memref<64x64xbf16, #tpu.memory_space<vmem>>, vector<64x64xbf16>
    %8 = arith.truncf %6 : vector<64x16xf32> to vector<64x16xbf16>
    %cst_10 = arith.constant dense<0.000000e+00> : vector<64x16xf32>
    %9 = tpu.matmul %7, %8, %cst_10 {dimension_numbers = #tpu.dot_dimension_numbers<[1], [0], [0], [1], [0, 0, 1, 1], [], []>} : vector<64x64xbf16>, vector<64x16xbf16>, vector<64x16xf32> -> vector<64x16xf32>
    %10 = vector.broadcast %5 : vector<1x16xf32> to vector<64x16xf32>
    %11 = arith.addf %9, %10 : vector<64x16xf32>
    %cst_11 = arith.constant 0.000000e+00 : f32
    %12 = vector.broadcast %cst_11 : f32 to vector<64x16xf32>
    %13 = arith.maximumf %11, %12 : vector<64x16xf32>
    %c0_12 = arith.constant 0 : index
    %c0_13 = arith.constant 0 : index
    %14 = vector.load %arg6[%c0_12, %c0_13] : memref<3x16xf32, #tpu.memory_space<vmem>>, vector<1x16xf32>
    %15 = vector.broadcast %14 : vector<1x16xf32> to vector<64x16xf32>
    %16 = arith.mulf %13, %15 : vector<64x16xf32>
    %cst_14 = arith.constant dense<0.000000e+00> : vector<64xf32>
    %17 = vector.multi_reduction <add>, %16, %cst_14 [1] : vector<64x16xf32> to vector<64xf32>
    %18 = vector.shape_cast %17 : vector<64xf32> to vector<64x1xf32>
    %19 = arith.addf %2, %18 : vector<64x1xf32>
    %c0_15 = arith.constant 0 : index
    %c0_16 = arith.constant 0 : index
    %20 = vector.load %arg7[%c0_15, %c0_16] : memref<3x16xf32, #tpu.memory_space<vmem>>, vector<1x16xf32>
    %21 = vector.broadcast %20 : vector<1x16xf32> to vector<64x16xf32>
    %22 = arith.mulf %13, %21 : vector<64x16xf32>
    %cst_17 = arith.constant dense<0.000000e+00> : vector<64xf32>
    %23 = vector.multi_reduction <add>, %22, %cst_17 [1] : vector<64x16xf32> to vector<64xf32>
    %24 = vector.shape_cast %23 : vector<64xf32> to vector<64x1xf32>
    %25 = arith.addf %3, %24 : vector<64x1xf32>
    %c0_18 = arith.constant 0 : index
    %c0_19 = arith.constant 0 : index
    %c0_20 = arith.constant 0 : index
    %26 = vector.load %arg4[%c0_18, %c0_19, %c0_20] : memref<2x16x16xbf16, #tpu.memory_space<vmem>>, vector<1x16x16xbf16>
    %27 = vector.shape_cast %26 : vector<1x16x16xbf16> to vector<16x16xbf16>
    %c1 = arith.constant 1 : index
    %c0_21 = arith.constant 0 : index
    %28 = vector.load %arg5[%c1, %c0_21] : memref<3x16xf32, #tpu.memory_space<vmem>>, vector<1x16xf32>
    %29 = arith.truncf %13 : vector<64x16xf32> to vector<64x16xbf16>
    %cst_22 = arith.constant dense<0.000000e+00> : vector<64x16xf32>
    %30 = tpu.matmul %29, %27, %cst_22 {dimension_numbers = #tpu.dot_dimension_numbers<[1], [0], [0], [1], [0, 0, 1, 1], [], []>} : vector<64x16xbf16>, vector<16x16xbf16>, vector<64x16xf32> -> vector<64x16xf32>
    %c0_23 = arith.constant 0 : index
    %c0_24 = arith.constant 0 : index
    %31 = vector.load %arg1[%c0_23, %c0_24] : memref<64x64xbf16, #tpu.memory_space<vmem>>, vector<64x64xbf16>
    %32 = arith.truncf %30 : vector<64x16xf32> to vector<64x16xbf16>
    %cst_25 = arith.constant dense<0.000000e+00> : vector<64x16xf32>
    %33 = tpu.matmul %31, %32, %cst_25 {dimension_numbers = #tpu.dot_dimension_numbers<[1], [0], [0], [1], [0, 0, 1, 1], [], []>} : vector<64x64xbf16>, vector<64x16xbf16>, vector<64x16xf32> -> vector<64x16xf32>
    %34 = vector.broadcast %28 : vector<1x16xf32> to vector<64x16xf32>
    %35 = arith.addf %33, %34 : vector<64x16xf32>
    %cst_26 = arith.constant 0.000000e+00 : f32
    %36 = vector.broadcast %cst_26 : f32 to vector<64x16xf32>
    %37 = arith.maximumf %35, %36 : vector<64x16xf32>
    %c1_27 = arith.constant 1 : index
    %c0_28 = arith.constant 0 : index
    %38 = vector.load %arg6[%c1_27, %c0_28] : memref<3x16xf32, #tpu.memory_space<vmem>>, vector<1x16xf32>
    %39 = vector.broadcast %38 : vector<1x16xf32> to vector<64x16xf32>
    %40 = arith.mulf %37, %39 : vector<64x16xf32>
    %cst_29 = arith.constant dense<0.000000e+00> : vector<64xf32>
    %41 = vector.multi_reduction <add>, %40, %cst_29 [1] : vector<64x16xf32> to vector<64xf32>
    %42 = vector.shape_cast %41 : vector<64xf32> to vector<64x1xf32>
    %43 = arith.addf %19, %42 : vector<64x1xf32>
    %c1_30 = arith.constant 1 : index
    %c0_31 = arith.constant 0 : index
    %44 = vector.load %arg7[%c1_30, %c0_31] : memref<3x16xf32, #tpu.memory_space<vmem>>, vector<1x16xf32>
    %45 = vector.broadcast %44 : vector<1x16xf32> to vector<64x16xf32>
    %46 = arith.mulf %37, %45 : vector<64x16xf32>
    %cst_32 = arith.constant dense<0.000000e+00> : vector<64xf32>
    %47 = vector.multi_reduction <add>, %46, %cst_32 [1] : vector<64x16xf32> to vector<64xf32>
    %48 = vector.shape_cast %47 : vector<64xf32> to vector<64x1xf32>
    %49 = arith.addf %25, %48 : vector<64x1xf32>
    %c1_33 = arith.constant 1 : index
    %c0_34 = arith.constant 0 : index
    %c0_35 = arith.constant 0 : index
    %50 = vector.load %arg4[%c1_33, %c0_34, %c0_35] : memref<2x16x16xbf16, #tpu.memory_space<vmem>>, vector<1x16x16xbf16>
    %51 = vector.shape_cast %50 : vector<1x16x16xbf16> to vector<16x16xbf16>
    %c2 = arith.constant 2 : index
    %c0_36 = arith.constant 0 : index
    %52 = vector.load %arg5[%c2, %c0_36] : memref<3x16xf32, #tpu.memory_space<vmem>>, vector<1x16xf32>
    %53 = arith.truncf %37 : vector<64x16xf32> to vector<64x16xbf16>
    %cst_37 = arith.constant dense<0.000000e+00> : vector<64x16xf32>
    %54 = tpu.matmul %53, %51, %cst_37 {dimension_numbers = #tpu.dot_dimension_numbers<[1], [0], [0], [1], [0, 0, 1, 1], [], []>} : vector<64x16xbf16>, vector<16x16xbf16>, vector<64x16xf32> -> vector<64x16xf32>
    %c0_38 = arith.constant 0 : index
    %c0_39 = arith.constant 0 : index
    %55 = vector.load %arg1[%c0_38, %c0_39] : memref<64x64xbf16, #tpu.memory_space<vmem>>, vector<64x64xbf16>
    %56 = arith.truncf %54 : vector<64x16xf32> to vector<64x16xbf16>
    %cst_40 = arith.constant dense<0.000000e+00> : vector<64x16xf32>
    %57 = tpu.matmul %55, %56, %cst_40 {dimension_numbers = #tpu.dot_dimension_numbers<[1], [0], [0], [1], [0, 0, 1, 1], [], []>} : vector<64x64xbf16>, vector<64x16xbf16>, vector<64x16xf32> -> vector<64x16xf32>
    %58 = vector.broadcast %52 : vector<1x16xf32> to vector<64x16xf32>
    %59 = arith.addf %57, %58 : vector<64x16xf32>
    %cst_41 = arith.constant 0.000000e+00 : f32
    %60 = vector.broadcast %cst_41 : f32 to vector<64x16xf32>
    %61 = arith.maximumf %59, %60 : vector<64x16xf32>
    %c2_42 = arith.constant 2 : index
    %c0_43 = arith.constant 0 : index
    %62 = vector.load %arg6[%c2_42, %c0_43] : memref<3x16xf32, #tpu.memory_space<vmem>>, vector<1x16xf32>
    %63 = vector.broadcast %62 : vector<1x16xf32> to vector<64x16xf32>
    %64 = arith.mulf %61, %63 : vector<64x16xf32>
    %cst_44 = arith.constant dense<0.000000e+00> : vector<64xf32>
    %65 = vector.multi_reduction <add>, %64, %cst_44 [1] : vector<64x16xf32> to vector<64xf32>
    %66 = vector.shape_cast %65 : vector<64xf32> to vector<64x1xf32>
    %67 = arith.addf %43, %66 : vector<64x1xf32>
    %c2_45 = arith.constant 2 : index
    %c0_46 = arith.constant 0 : index
    %68 = vector.load %arg7[%c2_45, %c0_46] : memref<3x16xf32, #tpu.memory_space<vmem>>, vector<1x16xf32>
    %69 = vector.broadcast %68 : vector<1x16xf32> to vector<64x16xf32>
    %70 = arith.mulf %61, %69 : vector<64x16xf32>
    %cst_47 = arith.constant dense<0.000000e+00> : vector<64xf32>
    %71 = vector.multi_reduction <add>, %70, %cst_47 [1] : vector<64x16xf32> to vector<64xf32>
    %72 = vector.shape_cast %71 : vector<64xf32> to vector<64x1xf32>
    %73 = arith.addf %49, %72 : vector<64x1xf32>
    %74 = math.tanh %67 : vector<64x1xf32>
    %75 = arith.mulf %73, %74 : vector<64x1xf32>
    %76 = tpu.transpose %74, [1, 0] : vector<64x1xf32> -> vector<1x64xf32>
    %77 = tpu.iota {dimensions = array<i32: 0>} : vector<64x1xi32>
    %78 = tpu.iota {dimensions = array<i32: 1>} : vector<1x64xi32>
    %79 = vector.broadcast %76 : vector<1x64xf32> to vector<64x64xf32>
    %80 = vector.broadcast %74 : vector<64x1xf32> to vector<64x64xf32>
    %81 = arith.cmpf ogt, %79, %80 : vector<64x64xf32>
    %82 = vector.broadcast %76 : vector<1x64xf32> to vector<64x64xf32>
    %83 = vector.broadcast %74 : vector<64x1xf32> to vector<64x64xf32>
    %84 = arith.cmpf oeq, %82, %83 : vector<64x64xf32>
    %85 = vector.broadcast %78 : vector<1x64xi32> to vector<64x64xi32>
    %86 = vector.broadcast %77 : vector<64x1xi32> to vector<64x64xi32>
    %87 = arith.cmpi slt, %85, %86 : vector<64x64xi32>
    %88 = arith.andi %84, %87 : vector<64x64xi1>
    %89 = arith.ori %81, %88 : vector<64x64xi1>
    %90 = arith.extui %89 : vector<64x64xi1> to vector<64x64xi32>
    %91 = arith.sitofp %90 : vector<64x64xi32> to vector<64x64xf32>
    %cst_48 = arith.constant dense<0.000000e+00> : vector<64xf32>
    %92 = vector.multi_reduction <add>, %91, %cst_48 [1] : vector<64x64xf32> to vector<64xf32>
    %93 = vector.shape_cast %92 : vector<64xf32> to vector<64x1xf32>
    %94 = tpu.iota {dimensions = array<i32: 1>} : vector<1x32xi32>
    %95 = arith.sitofp %94 : vector<1x32xi32> to vector<1x32xf32>
    %96 = vector.broadcast %93 : vector<64x1xf32> to vector<64x32xf32>
    %97 = vector.broadcast %95 : vector<1x32xf32> to vector<64x32xf32>
    %98 = arith.cmpf oeq, %96, %97 : vector<64x32xf32>
    %99 = arith.extui %98 : vector<64x32xi1> to vector<64x32xi32>
    %100 = arith.sitofp %99 : vector<64x32xi32> to vector<64x32xf32>
    %101 = vector.broadcast %75 : vector<64x1xf32> to vector<64x32xf32>
    %102 = arith.mulf %100, %101 : vector<64x32xf32>
    %cst_49 = arith.constant dense<0.000000e+00> : vector<32xf32>
    %103 = vector.multi_reduction <add>, %102, %cst_49 [0] : vector<64x32xf32> to vector<32xf32>
    %104 = vector.shape_cast %103 : vector<32xf32> to vector<1x32xf32>
    %c0_50 = arith.constant 0 : index
    %c0_51 = arith.constant 0 : index
    %105 = vector.load %arg8[%c0_50, %c0_51] : memref<32x32xf32, #tpu.memory_space<vmem>>, vector<32x32xf32>
    %cst_52 = arith.constant dense<0.000000e+00> : vector<1x32xf32>
    %106 = tpu.matmul %104, %105, %cst_52 {dimension_numbers = #tpu.dot_dimension_numbers<[1], [0], [0], [1], [0, 0, 1, 1], [], []>} : vector<1x32xf32>, vector<32x32xf32>, vector<1x32xf32> -> vector<1x32xf32>
    %c0_53 = arith.constant 0 : index
    %c0_54 = arith.constant 0 : index
    %107 = vector.load %arg9[%c0_53, %c0_54] : memref<1x32xf32, #tpu.memory_space<vmem>>, vector<1x32xf32>
    %108 = arith.addf %106, %107 : vector<1x32xf32>
    %cst_55 = arith.constant 0.000000e+00 : f32
    %109 = vector.broadcast %cst_55 : f32 to vector<1x32xf32>
    %110 = arith.maximumf %108, %109 : vector<1x32xf32>
    %c0_56 = arith.constant 0 : index
    %c0_57 = arith.constant 0 : index
    %111 = vector.load %arg10[%c0_56, %c0_57] : memref<32x4xf32, #tpu.memory_space<vmem>>, vector<32x4xf32>
    %cst_58 = arith.constant dense<0.000000e+00> : vector<1x4xf32>
    %112 = tpu.matmul %110, %111, %cst_58 {dimension_numbers = #tpu.dot_dimension_numbers<[1], [0], [0], [1], [0, 0, 1, 1], [], []>} : vector<1x32xf32>, vector<32x4xf32>, vector<1x4xf32> -> vector<1x4xf32>
    %c0_59 = arith.constant 0 : index
    %c0_60 = arith.constant 0 : index
    %113 = vector.load %arg11[%c0_59, %c0_60] : memref<1x4xf32, #tpu.memory_space<vmem>>, vector<1x4xf32>
    %114 = arith.addf %112, %113 : vector<1x4xf32>
    %cst_61 = arith.constant dense<0xFF800000> : vector<1xf32>
    %115 = vector.multi_reduction <maximumf>, %114, %cst_61 [1] : vector<1x4xf32> to vector<1xf32>
    %116 = vector.shape_cast %115 : vector<1xf32> to vector<1x1xf32>
    %117 = vector.broadcast %116 : vector<1x1xf32> to vector<1x4xf32>
    %118 = arith.subf %114, %117 : vector<1x4xf32>
    %119 = math.exp %118 : vector<1x4xf32>
    %cst_62 = arith.constant dense<0.000000e+00> : vector<1xf32>
    %120 = vector.multi_reduction <add>, %119, %cst_62 [1] : vector<1x4xf32> to vector<1xf32>
    %121 = vector.shape_cast %120 : vector<1xf32> to vector<1x1xf32>
    %122 = math.log %121 : vector<1x1xf32>
    %123 = vector.broadcast %122 : vector<1x1xf32> to vector<1x4xf32>
    %124 = arith.subf %118, %123 : vector<1x4xf32>
    %c0_63 = arith.constant 0 : index
    %c0_64 = arith.constant 0 : index
    %c0_65 = arith.constant 0 : index
    %125 = vector.load %arg12[%c0_63, %c0_64, %c0_65] : memref<1x1x4xf32, #tpu.memory_space<vmem>>, vector<1x1x4xf32>
    %126 = vector.shape_cast %125 : vector<1x1x4xf32> to vector<1x4xf32>
    %127 = vector.shape_cast %124 : vector<1x4xf32> to vector<1x1x4xf32>
    tpu.vector_store %arg12[%c0_63, %c0_64, %c0_65], %127 {strides = array<i32>} : memref<1x1x4xf32, #tpu.memory_space<vmem>>, vector<1x1x4xf32>,
    return
  }
  func.func @transform_0(%arg0: i32) -> (i32, i32) {
    %c0_i32 = arith.constant 0 : i32
    %c0_i32_0 = arith.constant 0 : i32
    %c0_i32_1 = arith.constant 0 : i32
    return %c0_i32, %c0_i32_0 : i32, i32
  }
  func.func @transform_1(%arg0: i32) -> (i32, i32, i32) {
    %c0_i32 = arith.constant 0 : i32
    %c0_i32_0 = arith.constant 0 : i32
    %c0_i32_1 = arith.constant 0 : i32
    return %arg0, %c0_i32, %c0_i32_0 : i32, i32, i32
  }
  func.func @transform_2(%arg0: i32) -> (i32, i32) {
    %c0_i32 = arith.constant 0 : i32
    %c0_i32_0 = arith.constant 0 : i32
    %c0_i32_1 = arith.constant 0 : i32
    return %c0_i32, %c0_i32_0 : i32, i32
  }
  func.func @transform_3(%arg0: i32) -> (i32, i32, i32) {
    %c0_i32 = arith.constant 0 : i32
    %c0_i32_0 = arith.constant 0 : i32
    %c0_i32_1 = arith.constant 0 : i32
    %c0_i32_2 = arith.constant 0 : i32
    return %c0_i32, %c0_i32_0, %c0_i32_1 : i32, i32, i32
  }
  func.func @transform_4(%arg0: i32) -> (i32, i32) {
    %c0_i32 = arith.constant 0 : i32
    %c0_i32_0 = arith.constant 0 : i32
    %c0_i32_1 = arith.constant 0 : i32
    return %c0_i32, %c0_i32_0 : i32, i32
  }
  func.func @transform_5(%arg0: i32) -> (i32, i32) {
    %c0_i32 = arith.constant 0 : i32
    %c0_i32_0 = arith.constant 0 : i32
    %c0_i32_1 = arith.constant 0 : i32
    return %c0_i32, %c0_i32_0 : i32, i32
  }
  func.func @transform_6(%arg0: i32) -> (i32, i32) {
    %c0_i32 = arith.constant 0 : i32
    %c0_i32_0 = arith.constant 0 : i32
    %c0_i32_1 = arith.constant 0 : i32
    return %c0_i32, %c0_i32_0 : i32, i32
  }
  func.func @transform_7(%arg0: i32) -> (i32, i32) {
    %c0_i32 = arith.constant 0 : i32
    %c0_i32_0 = arith.constant 0 : i32
    %c0_i32_1 = arith.constant 0 : i32
    return %c0_i32, %c0_i32_0 : i32, i32
  }
  func.func @transform_8(%arg0: i32) -> (i32, i32) {
    %c0_i32 = arith.constant 0 : i32
    %c0_i32_0 = arith.constant 0 : i32
    %c0_i32_1 = arith.constant 0 : i32
    return %c0_i32, %c0_i32_0 : i32, i32
  }
  func.func @transform_9(%arg0: i32) -> (i32, i32) {
    %c0_i32 = arith.constant 0 : i32
    %c0_i32_0 = arith.constant 0 : i32
    %c0_i32_1 = arith.constant 0 : i32
    return %c0_i32, %c0_i32_0 : i32, i32
  }
  func.func @transform_10(%arg0: i32) -> (i32, i32) {
    %c0_i32 = arith.constant 0 : i32
    %c0_i32_0 = arith.constant 0 : i32
    %c0_i32_1 = arith.constant 0 : i32
    return %c0_i32, %c0_i32_0 : i32, i32
  }
  func.func @transform_11(%arg0: i32) -> (i32, i32, i32) {
    %c0_i32 = arith.constant 0 : i32
    %c0_i32_0 = arith.constant 0 : i32
    %c0_i32_1 = arith.constant 0 : i32
    return %arg0, %c0_i32, %c0_i32_0 : i32, i32, i32
  }
}

</mosaic_0001>

<llo_original>
// kernel: gcn_model_w_topk_forward.1
$region0: #{gcn_model_w_topk_forward.1}
  #allocation0 [shape = 'u32[]', space=smem, size = 0x4, offset = 0x4, fixed_abs, tag = 'smem constant byte address 0x4 - core index']
  #allocation1 [shape = 'u32[72,128]{1,0:T(1,128)}', space=vmem, size = 0x9000, scoped, tag = 'internal scratch']
  %s0 = inlined_call_operand.vmem [shape: bf16[64,64], index: 0, kind: input, shape index: {}]
  %s1 = inlined_call_operand.vmem [shape: bf16[2,64,8], index: 1, kind: input, shape index: {}]
  %s2 = inlined_call_operand.vmem [shape: bf16[8,16], index: 2, kind: input, shape index: {}]
  %s3 = inlined_call_operand.vmem [shape: bf16[2,16,16], index: 3, kind: input, shape index: {}]
  %s4 = inlined_call_operand.vmem [shape: f32[3,16], index: 4, kind: input, shape index: {}]
  %s5 = inlined_call_operand.vmem [shape: f32[3,16], index: 5, kind: input, shape index: {}]
  %s6 = inlined_call_operand.vmem [shape: f32[3,16], index: 6, kind: input, shape index: {}]
  %s7 = inlined_call_operand.vmem [shape: f32[32,32], index: 7, kind: input, shape index: {}]
  %s8 = inlined_call_operand.vmem [shape: f32[1,32], index: 8, kind: input, shape index: {}]
  %s9 = inlined_call_operand.vmem [shape: f32[32,4], index: 9, kind: input, shape index: {}]
  %s10 = inlined_call_operand.vmem [shape: f32[1,4], index: 10, kind: input, shape index: {}]
  %s11 = inlined_call_operand.hbm [shape: f32[2,1,4], index: 11, kind: output, shape index: {}]
  %s12 = sld [smem:[#allocation0]]
  $region77: #{gcn_model_w_topk_forward.1} parent=0
    _
  %s14 = ssub.s32 1, %s12
  %s15 = scalar_select 0, %s14, %s12
  $region1: #{gcn_model_w_topk_forward.1} parent=0
    #allocation2 [shape = 'u8[1024]{0}', space=vmem, size = 0x400, scoped, tag = 'output window, operand 0']
    #allocation3 [shape = 's32[2]{0}', space=sflag, size = 0x8, scoped, tag = 'scoped memory for gcn_model_w_topk_forward.1']
    %16 = vsyncpa [#allocation3], 0
    %s17 = scalar_lea.sflag [#allocation3], 1
    %18 = vsyncpa %s17, 0
    loop: start=0, step=1, limit=4
    $region2: #{gcn_model_w_topk_forward.1} parent=1 // loop_pre_header
      _
    $region3: #{gcn_model_w_topk_forward.1} parent=1 // loop_header
      %s20 = sphi 0, %s24
      %p21 = scmp.ge.s32.totalorder %s20, 4
      %s28 = sphi 0, %s28
      %s30 = sphi 0, %s28
      %s31 = sphi 0, %s30
      %s45 = sphi 0, %s31
      %s51 = sphi 0, %s53
      %s54 = sphi 0, %s51
      %s55 = sphi 0, %s54
      %s71 = sphi 0, %s55
      %s75 = sphi 0, %s75
      %s77 = sphi 0, %s75
      %s78 = sphi 0, %s77
      %s92 = sphi 0, %s78
      %s96 = sphi 0, %s96
      %s98 = sphi 0, %s96
      %s99 = sphi 0, %s98
      %s113 = sphi 0, %s99
      %s117 = sphi 0, %s117
      %s119 = sphi 0, %s117
      %s120 = sphi 0, %s119
      %s134 = sphi 0, %s120
      %s138 = sphi 0, %s138
      %s140 = sphi 0, %s138
      %s141 = sphi 0, %s140
      %s155 = sphi 0, %s141
      %s159 = sphi 0, %s159
      %s161 = sphi 0, %s159
      %s162 = sphi 0, %s161
      %s176 = sphi 0, %s162
      %s180 = sphi 0, %s180
      %s182 = sphi 0, %s180
      %s183 = sphi 0, %s182
      %s197 = sphi 0, %s183
      %s201 = sphi 0, %s201
      %s203 = sphi 0, %s201
      %s204 = sphi 0, %s203
      %s218 = sphi 0, %s204
      %s222 = sphi 0, %s222
      %s224 = sphi 0, %s222
      %s225 = sphi 0, %s224
      %s239 = sphi 0, %s225
      %s243 = sphi 0, %s243
      %s245 = sphi 0, %s243
      %s246 = sphi 0, %s245
      %s260 = sphi 0, %s246
      %s266 = sphi 0, %s268
      %s269 = sphi 0, %s266
      %s270 = sphi 0, %s269
      %s286 = sphi 0, %s270
    $region4: #{gcn_model_w_topk_forward.1} parent=1 // loop_header_branch
      %23 = sbr.rel (%p21) target = $region8
    $region5: #{gcn_model_w_topk_forward.1} parent=1 // loop_body
      %s25 = ssub.s32 %s20, 1
      %s26 = ssub.s32 %s20, 2
      %s27 = sadd.s32 %s20, 1
      %s29 = sadd.s32 %s28, 1
      %p32 = scmp.eq.s32.totalorder %s20, 1
      %p33 = scmp.ne.s32.totalorder %s28, %s30
      %p34 = scmp.eq.s32.totalorder %s20, 0
      %p35 = por %p33, %p34
      %p36 = scmp.ne.s32.totalorder %s28, %s30
      %p37 = scmp.eq.s32.totalorder %s25, 1
      %p38 = por %p36, %p37
      %p39 = scmp.ne.s32.totalorder %s30, %s31
      %p40 = scmp.eq.s32.totalorder %s25, 0
      %p41 = por %p39, %p40
      %p42 = scmp.ne.s32.totalorder %s30, %s31
      %p43 = scmp.eq.s32.totalorder %s26, 1
      %p44 = por %p42, %p43
      %p46 = scmp.ne.s32.totalorder %s31, %s45
      %p47 = scmp.eq.s32.totalorder %s26, 0
      %p48 = por %p46, %p47
      %s49 = ssub.s32 %s20, %s27
      %p50 = scmp.eq.s32.totalorder %s49, 0
      %s52 = sadd.s32 %s51, 1
      %s53 = scalar_select %p50, %s51, %s52
      %p56 = pneg %p50
      %p57 = scmp.eq.s32.totalorder %s20, 1
      %p58 = por %p56, %p57
      %p59 = scmp.ne.s32.totalorder %s51, %s54
      %p60 = scmp.eq.s32.totalorder %s20, 0
      %p61 = por %p59, %p60
      %p62 = scmp.ne.s32.totalorder %s51, %s54
      %p63 = scmp.eq.s32.totalorder %s25, 1
      %p64 = por %p62, %p63
      %p65 = scmp.ne.s32.totalorder %s54, %s55
      %p66 = scmp.eq.s32.totalorder %s25, 0
      %p67 = por %p65, %p66
      %p68 = scmp.ne.s32.totalorder %s54, %s55
      %p69 = scmp.eq.s32.totalorder %s26, 1
      %p70 = por %p68, %p69
      %p72 = scmp.ne.s32.totalorder %s55, %s71
      %p73 = scmp.eq.s32.totalorder %s26, 0
      %p74 = por %p72, %p73
      %s76 = sadd.s32 %s75, 1
      %p79 = scmp.eq.s32.totalorder %s20, 1
      %p80 = scmp.ne.s32.totalorder %s75, %s77
      %p81 = scmp.eq.s32.totalorder %s20, 0
      %p82 = por %p80, %p81
      %p83 = scmp.ne.s32.totalorder %s75, %s77
      %p84 = scmp.eq.s32.totalorder %s25, 1
      %p85 = por %p83, %p84
      %p86 = scmp.ne.s32.totalorder %s77, %s78
      %p87 = scmp.eq.s32.totalorder %s25, 0
      %p88 = por %p86, %p87
      %p89 = scmp.ne.s32.totalorder %s77, %s78
      %p90 = scmp.eq.s32.totalorder %s26, 1
      %p91 = por %p89, %p90
      %p93 = scmp.ne.s32.totalorder %s78, %s92
      %p94 = scmp.eq.s32.totalorder %s26, 0
      %p95 = por %p93, %p94
      %s97 = sadd.s32 %s96, 1
      %p100 = scmp.eq.s32.totalorder %s20, 1
      %p101 = scmp.ne.s32.totalorder %s96, %s98
      %p102 = scmp.eq.s32.totalorder %s20, 0
      %p103 = por %p101, %p102
      %p104 = scmp.ne.s32.totalorder %s96, %s98
      %p105 = scmp.eq.s32.totalorder %s25, 1
      %p106 = por %p104, %p105
      %p107 = scmp.ne.s32.totalorder %s98, %s99
      %p108 = scmp.eq.s32.totalorder %s25, 0
      %p109 = por %p107, %p108
      %p110 = scmp.ne.s32.totalorder %s98, %s99
      %p111 = scmp.eq.s32.totalorder %s26, 1
      %p112 = por %p110, %p111
      %p114 = scmp.ne.s32.totalorder %s99, %s113
      %p115 = scmp.eq.s32.totalorder %s26, 0
      %p116 = por %p114, %p115
      %s118 = sadd.s32 %s117, 1
      %p121 = scmp.eq.s32.totalorder %s20, 1
      %p122 = scmp.ne.s32.totalorder %s117, %s119
      %p123 = scmp.eq.s32.totalorder %s20, 0
      %p124 = por %p122, %p123
      %p125 = scmp.ne.s32.totalorder %s117, %s119
      %p126 = scmp.eq.s32.totalorder %s25, 1
      %p127 = por %p125, %p126
      %p128 = scmp.ne.s32.totalorder %s119, %s120
      %p129 = scmp.eq.s32.totalorder %s25, 0
      %p130 = por %p128, %p129
      %p131 = scmp.ne.s32.totalorder %s119, %s120
      %p132 = scmp.eq.s32.totalorder %s26, 1
      %p133 = por %p131, %p132
      %p135 = scmp.ne.s32.totalorder %s120, %s134
      %p136 = scmp.eq.s32.totalorder %s26, 0
      %p137 = por %p135, %p136
      %s139 = sadd.s32 %s138, 1
      %p142 = scmp.eq.s32.totalorder %s20, 1
      %p143 = scmp.ne.s32.totalorder %s138, %s140
      %p144 = scmp.eq.s32.totalorder %s20, 0
      %p145 = por %p143, %p144
      %p146 = scmp.ne.s32.totalorder %s138, %s140
      %p147 = scmp.eq.s32.totalorder %s25, 1
      %p148 = por %p146, %p147
      %p149 = scmp.ne.s32.totalorder %s140, %s141
      %p150 = scmp.eq.s32.totalorder %s25, 0
      %p151 = por %p149, %p150
      %p152 = scmp.ne.s32.totalorder %s140, %s141
      %p153 = scmp.eq.s32.totalorder %s26, 1
      %p154 = por %p152, %p153
      %p156 = scmp.ne.s32.totalorder %s141, %s155
      %p157 = scmp.eq.s32.totalorder %s26, 0
      %p158 = por %p156, %p157
      %s160 = sadd.s32 %s159, 1
      %p163 = scmp.eq.s32.totalorder %s20, 1
      %p164 = scmp.ne.s32.totalorder %s159, %s161
      %p165 = scmp.eq.s32.totalorder %s20, 0
      %p166 = por %p164, %p165
      %p167 = scmp.ne.s32.totalorder %s159, %s161
      %p168 = scmp.eq.s32.totalorder %s25, 1
      %p169 = por %p167, %p168
      %p170 = scmp.ne.s32.totalorder %s161, %s162
      %p171 = scmp.eq.s32.totalorder %s25, 0
      %p172 = por %p170, %p171
      %p173 = scmp.ne.s32.totalorder %s161, %s162
      %p174 = scmp.eq.s32.totalorder %s26, 1
      %p175 = por %p173, %p174
      %p177 = scmp.ne.s32.totalorder %s162, %s176
      %p178 = scmp.eq.s32.totalorder %s26, 0
      %p179 = por %p177, %p178
      %s181 = sadd.s32 %s180, 1
      %p184 = scmp.eq.s32.totalorder %s20, 1
      %p185 = scmp.ne.s32.totalorder %s180, %s182
      %p186 = scmp.eq.s32.totalorder %s20, 0
      %p187 = por %p185, %p186
      %p188 = scmp.ne.s32.totalorder %s180, %s182
      %p189 = scmp.eq.s32.totalorder %s25, 1
      %p190 = por %p188, %p189
      %p191 = scmp.ne.s32.totalorder %s182, %s183
      %p192 = scmp.eq.s32.totalorder %s25, 0
      %p193 = por %p191, %p192
      %p194 = scmp.ne.s32.totalorder %s182, %s183
      %p195 = scmp.eq.s32.totalorder %s26, 1
      %p196 = por %p194, %p195
      %p198 = scmp.ne.s32.totalorder %s183, %s197
      %p199 = scmp.eq.s32.totalorder %s26, 0
      %p200 = por %p198, %p199
      %s202 = sadd.s32 %s201, 1
      %p205 = scmp.eq.s32.totalorder %s20, 1
      %p206 = scmp.ne.s32.totalorder %s201, %s203
      %p207 = scmp.eq.s32.totalorder %s20, 0
      %p208 = por %p206, %p207
      %p209 = scmp.ne.s32.totalorder %s201, %s203
      %p210 = scmp.eq.s32.totalorder %s25, 1
      %p211 = por %p209, %p210
      %p212 = scmp.ne.s32.totalorder %s203, %s204
      %p213 = scmp.eq.s32.totalorder %s25, 0
      %p214 = por %p212, %p213
      %p215 = scmp.ne.s32.totalorder %s203, %s204
      %p216 = scmp.eq.s32.totalorder %s26, 1
      %p217 = por %p215, %p216
      %p219 = scmp.ne.s32.totalorder %s204, %s218
      %p220 = scmp.eq.s32.totalorder %s26, 0
      %p221 = por %p219, %p220
      %s223 = sadd.s32 %s222, 1
      %p226 = scmp.eq.s32.totalorder %s20, 1
      %p227 = scmp.ne.s32.totalorder %s222, %s224
      %p228 = scmp.eq.s32.totalorder %s20, 0
      %p229 = por %p227, %p228
      %p230 = scmp.ne.s32.totalorder %s222, %s224
      %p231 = scmp.eq.s32.totalorder %s25, 1
      %p232 = por %p230, %p231
      %p233 = scmp.ne.s32.totalorder %s224, %s225
      %p234 = scmp.eq.s32.totalorder %s25, 0
      %p235 = por %p233, %p234
      %p236 = scmp.ne.s32.totalorder %s224, %s225
      %p237 = scmp.eq.s32.totalorder %s26, 1
      %p238 = por %p236, %p237
      %p240 = scmp.ne.s32.totalorder %s225, %s239
      %p241 = scmp.eq.s32.totalorder %s26, 0
      %p242 = por %p240, %p241
      %s244 = sadd.s32 %s243, 1
      %p247 = scmp.eq.s32.totalorder %s20, 1
      %p248 = scmp.ne.s32.totalorder %s243, %s245
      %p249 = scmp.eq.s32.totalorder %s20, 0
      %p250 = por %p248, %p249
      %p251 = scmp.ne.s32.totalorder %s243, %s245
      %p252 = scmp.eq.s32.totalorder %s25, 1
      %p253 = por %p251, %p252
      %p254 = scmp.ne.s32.totalorder %s245, %s246
      %p255 = scmp.eq.s32.totalorder %s25, 0
      %p256 = por %p254, %p255
      %p257 = scmp.ne.s32.totalorder %s245, %s246
      %p258 = scmp.eq.s32.totalorder %s26, 1
      %p259 = por %p257, %p258
      %p261 = scmp.ne.s32.totalorder %s246, %s260
      %p262 = scmp.eq.s32.totalorder %s26, 0
      %p263 = por %p261, %p262
      %s264 = ssub.s32 %s20, %s27
      %p265 = scmp.eq.s32.totalorder %s264, 0
      %s267 = sadd.s32 %s266, 1
      %s268 = scalar_select %p265, %s266, %s267
      %p271 = pneg %p265
      %p272 = scmp.eq.s32.totalorder %s20, 1
      %p273 = por %p271, %p272
      %p274 = scmp.ne.s32.totalorder %s266, %s269
      %p275 = scmp.eq.s32.totalorder %s20, 0
      %p276 = por %p274, %p275
      %p277 = scmp.ne.s32.totalorder %s266, %s269
      %p278 = scmp.eq.s32.totalorder %s25, 1
      %p279 = por %p277, %p278
      %p280 = scmp.ne.s32.totalorder %s269, %s270
      %p281 = scmp.eq.s32.totalorder %s25, 0
      %p282 = por %p280, %p281
      %p283 = scmp.ne.s32.totalorder %s269, %s270
      %p284 = scmp.eq.s32.totalorder %s26, 1
      %p285 = por %p283, %p284
      %p287 = scmp.ne.s32.totalorder %s270, %s286
      %p288 = scmp.eq.s32.totalorder %s26, 0
      %p289 = por %p287, %p288
      %p290 = scmp.le.s32.totalorder 1, %s20
      %p291 = scmp.lt.s32.totalorder %s20, 3
      %p292 = pnand %p290, %p291
      %p293 = pneg %p292
      // Predicated region
      $region9: #{gcn_model_w_topk_forward.1} parent=5 // pred_check
        _
      $region10: #{gcn_model_w_topk_forward.1} parent=5 // pred_check_branch
        %295 = sbr.rel (%p292) target = $region12
      $region11: #{gcn_model_w_topk_forward.1} parent=5 // pred_region
        %s296 = ssub.s32 %s20, 1
        // Predicated region
        $region13: #{gcn_model_w_topk_forward.1} parent=11 // pred_check
          %p297 = pneg %p41
        $region14: #{gcn_model_w_topk_forward.1} parent=11 // pred_check_branch
          %299 = sbr.rel (%p297) target = $region16
        $region15: #{gcn_model_w_topk_forward.1} parent=11 // pred_region
          _
        $region16: #{gcn_model_w_topk_forward.1} parent=11 // pred_fallthru
          _
        // Predicated region
        $region17: #{gcn_model_w_topk_forward.1} parent=11 // pred_check
          %p300 = pneg %p88
        $region18: #{gcn_model_w_topk_forward.1} parent=11 // pred_check_branch
          %302 = sbr.rel (%p300) target = $region20
        $region19: #{gcn_model_w_topk_forward.1} parent=11 // pred_region
          _
        $region20: #{gcn_model_w_topk_forward.1} parent=11 // pred_fallthru
          _
        // Predicated region
        $region21: #{gcn_model_w_topk_forward.1} parent=11 // pred_check
          %p303 = pneg %p109
        $region22: #{gcn_model_w_topk_forward.1} parent=11 // pred_check_branch
          %305 = sbr.rel (%p303) target = $region24
        $region23: #{gcn_model_w_topk_forward.1} parent=11 // pred_region
          _
        $region24: #{gcn_model_w_topk_forward.1} parent=11 // pred_fallthru
          _
        // Predicated region
        $region25: #{gcn_model_w_topk_forward.1} parent=11 // pred_check
          %p306 = pneg %p130
        $region26: #{gcn_model_w_topk_forward.1} parent=11 // pred_check_branch
          %308 = sbr.rel (%p306) target = $region28
        $region27: #{gcn_model_w_topk_forward.1} parent=11 // pred_region
          _
        $region28: #{gcn_model_w_topk_forward.1} parent=11 // pred_fallthru
          _
        // Predicated region
        $region29: #{gcn_model_w_topk_forward.1} parent=11 // pred_check
          %p309 = pneg %p151
        $region30: #{gcn_model_w_topk_forward.1} parent=11 // pred_check_branch
          %311 = sbr.rel (%p309) target = $region32
        $region31: #{gcn_model_w_topk_forward.1} parent=11 // pred_region
          _
        $region32: #{gcn_model_w_topk_forward.1} parent=11 // pred_fallthru
          _
        // Predicated region
        $region33: #{gcn_model_w_topk_forward.1} parent=11 // pred_check
          %p312 = pneg %p172
        $region34: #{gcn_model_w_topk_forward.1} parent=11 // pred_check_branch
          %314 = sbr.rel (%p312) target = $region36
        $region35: #{gcn_model_w_topk_forward.1} parent=11 // pred_region
          _
        $region36: #{gcn_model_w_topk_forward.1} parent=11 // pred_fallthru
          _
        // Predicated region
        $region37: #{gcn_model_w_topk_forward.1} parent=11 // pred_check
          %p315 = pneg %p193
        $region38: #{gcn_model_w_topk_forward.1} parent=11 // pred_check_branch
          %317 = sbr.rel (%p315) target = $region40
        $region39: #{gcn_model_w_topk_forward.1} parent=11 // pred_region
          _
        $region40: #{gcn_model_w_topk_forward.1} parent=11 // pred_fallthru
          _
        // Predicated region
        $region41: #{gcn_model_w_topk_forward.1} parent=11 // pred_check
          %p318 = pneg %p214
        $region42: #{gcn_model_w_topk_forward.1} parent=11 // pred_check_branch
          %320 = sbr.rel (%p318) target = $region44
        $region43: #{gcn_model_w_topk_forward.1} parent=11 // pred_region
          _
        $region44: #{gcn_model_w_topk_forward.1} parent=11 // pred_fallthru
          _
        // Predicated region
        $region45: #{gcn_model_w_topk_forward.1} parent=11 // pred_check
          %p321 = pneg %p235
        $region46: #{gcn_model_w_topk_forward.1} parent=11 // pred_check_branch
          %323 = sbr.rel (%p321) target = $region48
        $region47: #{gcn_model_w_topk_forward.1} parent=11 // pred_region
          _
        $region48: #{gcn_model_w_topk_forward.1} parent=11 // pred_fallthru
          _
        // Predicated region
        $region49: #{gcn_model_w_topk_forward.1} parent=11 // pred_check
          %p324 = pneg %p256
        $region50: #{gcn_model_w_topk_forward.1} parent=11 // pred_check_branch
          %326 = sbr.rel (%p324) target = $region52
        $region51: #{gcn_model_w_topk_forward.1} parent=11 // pred_region
          _
        $region52: #{gcn_model_w_topk_forward.1} parent=11 // pred_fallthru
          _
      $region12: #{gcn_model_w_topk_forward.1} parent=5 // pred_fallthru
        _
      %p327 = scmp.lt.s32.totalorder %s20, 2
      // Predicated region
      $region53: #{gcn_model_w_topk_forward.1} parent=5 // pred_check
        %p328 = pneg %p327
      $region54: #{gcn_model_w_topk_forward.1} parent=5 // pred_check_branch
        %330 = sbr.rel (%p328) target = $region56
      $region55: #{gcn_model_w_topk_forward.1} parent=5 // pred_region
        // Predicated region
        $region57: #{gcn_model_w_topk_forward.1} parent=55 // pred_check
          %p331 = pneg %p61
        $region58: #{gcn_model_w_topk_forward.1} parent=55 // pred_check_branch
          %333 = sbr.rel (%p331) target = $region60
        $region59: #{gcn_model_w_topk_forward.1} parent=55 // pred_region
          %p334 = scmp.lt.s32.totalorder %s20, 1
          %s335 = scalar_select %p334, %s20, 1
          %s336 = smul.addr %s335, 8
          %s337 = smul.addr %s336, 4
          %s338 = scalar_lea.vmem %s1, %s337
        $region60: #{gcn_model_w_topk_forward.1} parent=55 // pred_fallthru
          _
      $region56: #{gcn_model_w_topk_forward.1} parent=5 // pred_fallthru
        _
      %p339 = scmp.le.s32.totalorder 1, %s20
      %p340 = scmp.lt.s32.totalorder %s20, 3
      %p341 = pnand %p339, %p340
      %p342 = pneg %p341
      // Predicated region
      $region61: #{gcn_model_w_topk_forward.1} parent=5 // pred_check
        _
      $region62: #{gcn_model_w_topk_forward.1} parent=5 // pred_check_branch
        %344 = sbr.rel (%p341) target = $region64
      $region63: #{gcn_model_w_topk_forward.1} parent=5 // pred_region
        %s345 = ssub.s32 %s20, 1
        %p346 = pneg %p41
        %p347 = pneg %p38
        %p348 = scmp.lt.s32.totalorder %s25, 1
        %s349 = scalar_select %p348, %s25, 1
        %s350 = smul.addr %s349, 8
        %s351 = smul.addr %s350, 4
        %s352 = scalar_lea.vmem %s1, %s351
        %p353 = pneg %p67
        %p354 = pneg %p64
        %p355 = pneg %p88
        %p356 = pneg %p85
        %p357 = pneg %p109
        %p358 = pneg %p106
        %p359 = pneg %p130
        %p360 = pneg %p127
        %p361 = pneg %p151
        %p362 = pneg %p148
        %p363 = pneg %p172
        %p364 = pneg %p169
        %p365 = pneg %p193
        %p366 = pneg %p190
        %p367 = pneg %p214
        %p368 = pneg %p211
        %p369 = pneg %p235
        %p370 = pneg %p232
        %p371 = pneg %p256
        %p372 = pneg %p253
        %p373 = pneg %p282
        %p374 = pneg %p279
        %s375 = sand.u32 %s269, 1
        %s376 = scalar_lea.sflag [#allocation3], %s375
        %s377 = sand.u32 %s269, 1
        %s378 = scalar_lea.vmem [#allocation2], %s377
        %p379 = scmp.lt.s32.totalorder %s25, 1
        %s380 = scalar_select %p379, %s25, 1
        %s381 = smul.addr %s380, 8
        %s382 = smul.addr %s381, 4
        %s383 = scalar_lea.vmem %s1, %s382
        %v385 = vld [vmem:[%s383] sm:$0xf]
        %v386 = vld [vmem:[%s383 + $0x4] sm:$0xf]
        %v387 = vld [vmem:[%s383 + $0x8] sm:$0xf]
        %v388 = vld [vmem:[%s383 + $0xc] sm:$0xf]
        %v389 = vld [vmem:[%s383 + $0x10] sm:$0xf]
        %v390 = vld [vmem:[%s383 + $0x14] sm:$0xf]
        %v391 = vld [vmem:[%s383 + $0x18] sm:$0xf]
        %v392 = vld [vmem:[%s383 + $0x1c] sm:$0xf]
        %v393 = vld [vmem:[%s2] sm:$0xf]
        %v394 = vld [vmem:[%s4] sm:$0x1]
        %v403 = vunpack.c.l.b16 %v385
        %v404 = vunpack.c.l.b16 %v386
        %v405 = vunpack.c.l.b16 %v387
        %v406 = vunpack.c.l.b16 %v388
        %v407 = vunpack.c.l.b16 %v389
        %v408 = vunpack.c.l.b16 %v390
        %v409 = vunpack.c.l.b16 %v391
        %v410 = vunpack.c.l.b16 %v392
        %v411 = vpack.c.b16 %v404, %v403
        %v412 = vpack.c.b16 %v406, %v405
        %v413 = vpack.c.b16 %v408, %v407
        %v414 = vpack.c.b16 %v410, %v409
        %vm415 = vcmask 64512
        %v417 = vsel %vm415, %v411, 0
        %v420 = vsel %vm415, %v412, 0
        %v423 = vsel %vm415, %v413, 0
        %v426 = vsel %vm415, %v414, 0
        %vm428 = vcmask 1043456
        %v430 = vsel %vm428, %v393, 0
        %432 = vmatpush.bf16.msra.mxu0 0
        %433 = vmatpush.bf16.msra.mxu0 0
        %434 = vmatpush.bf16.msra.mxu0 0
        %435 = vmatpush.bf16.msra.mxu0 0
        %436 = vmatpush.bf16.msra.mxu0 0
        %437 = vmatpush.bf16.msra.mxu0 0
        %438 = vmatpush.bf16.msra.mxu0 0
        %439 = vmatpush.bf16.msra.mxu0 %v430
        %440 = vmatmul.bf16.gmra.mxu0 %v417
        %v441 = vpop.f32.mrf.mxu0
        %v442 = vadd.f32 0.0, %v441
        %v443 = vpop.f32.mrf.mxu0
        %v444 = vadd.f32 0.0, %v443
        %445 = vmatmul.bf16.gmra.mxu0 %v420
        %v446 = vpop.f32.mrf.mxu0
        %v447 = vadd.f32 0.0, %v446
        %v448 = vpop.f32.mrf.mxu0
        %v449 = vadd.f32 0.0, %v448
        %450 = vmatmul.bf16.gmra.mxu0 %v423
        %v451 = vpop.f32.mrf.mxu0
        %v452 = vadd.f32 0.0, %v451
        %v453 = vpop.f32.mrf.mxu0
        %v454 = vadd.f32 0.0, %v453
        %455 = vmatmul.bf16.gmra.mxu0 %v426
        %v456 = vpop.f32.mrf.mxu0
        %v457 = vadd.f32 0.0, %v456
        %v458 = vpop.f32.mrf.mxu0
        %v459 = vadd.f32 0.0, %v458
        %460 = vdwg.mxu0
        %v461 = vld [vmem:[%s0] sm:$0xf]
        %v462 = vld [vmem:[%s0 + $0x4] sm:$0xf]
        %v463 = vld [vmem:[%s0 + $0x8] sm:$0xf]
        %v464 = vld [vmem:[%s0 + $0xc] sm:$0xf]
        %v465 = vld [vmem:[%s0 + $0x10] sm:$0xf]
        %v466 = vld [vmem:[%s0 + $0x14] sm:$0xf]
        %v467 = vld [vmem:[%s0 + $0x18] sm:$0xf]
        %v468 = vld [vmem:[%s0 + $0x1c] sm:$0xf]
        %v469 = vpack.c.bf16 %v444, %v442
        %v470 = vpack.c.bf16 %v449, %v447
        %v471 = vpack.c.bf16 %v454, %v452
        %v472 = vpack.c.bf16 %v459, %v457
        %v473 = vperm.slane %v394, 0
        %v482 = vunpack.c.l.b16 %v461
        %v483 = vunpack.c.l.b16 %v462
        %v484 = vunpack.c.l.b16 %v463
        %v485 = vunpack.c.l.b16 %v464
        %v486 = vunpack.c.l.b16 %v465
        %v487 = vunpack.c.l.b16 %v466
        %v488 = vunpack.c.l.b16 %v467
        %v489 = vunpack.c.l.b16 %v468
        %v490 = vpack.c.b16 %v483, %v482
        %v491 = vpack.c.b16 %v485, %v484
        %v492 = vpack.c.b16 %v487, %v486
        %v493 = vpack.c.b16 %v489, %v488
        %vm494 = vcmask 523264
        %v496 = vsel %vm494, %v490, 0
        %v499 = vsel %vm494, %v491, 0
        %v502 = vsel %vm494, %v492, 0
        %v505 = vsel %vm494, %v493, 0
        %507 = vmatpush.bf16.msra.mxu0 0
        %508 = vmatpush.bf16.msra.mxu0 0
        %509 = vmatpush.bf16.msra.mxu0 0
        %510 = vmatpush.bf16.msra.mxu0 0
        %511 = vmatpush.bf16.msra.mxu0 %v472
        %512 = vmatpush.bf16.msra.mxu0 %v471
        %513 = vmatpush.bf16.msra.mxu0 %v470
        %514 = vmatpush.bf16.msra.mxu0 %v469
        %515 = vmatmul.bf16.gmra.mxu0 %v496
        %v516 = vpop.f32.mrf.mxu0
        %v517 = vadd.f32 %v473, %v516
        %v518 = vpop.f32.mrf.mxu0
        %v519 = vadd.f32 %v473, %v518
        %520 = vmatmul.bf16.gmra.mxu0 %v499
        %v521 = vpop.f32.mrf.mxu0
        %v522 = vadd.f32 %v473, %v521
        %v523 = vpop.f32.mrf.mxu0
        %v524 = vadd.f32 %v473, %v523
        %525 = vmatmul.bf16.gmra.mxu0 %v502
        %v526 = vpop.f32.mrf.mxu0
        %v527 = vadd.f32 %v473, %v526
        %v528 = vpop.f32.mrf.mxu0
        %v529 = vadd.f32 %v473, %v528
        %530 = vmatmul.bf16.gmra.mxu0 %v505
        %v531 = vpop.f32.mrf.mxu0
        %v532 = vadd.f32 %v473, %v531
        %v533 = vpop.f32.mrf.mxu0
        %v534 = vadd.f32 %v473, %v533
        %535 = vdwg.mxu0
        %v536 = vmax.f32 %v517, 0.0
        %v537 = vmax.f32 %v519, 0.0
        %v538 = vmax.f32 %v522, 0.0
        %v539 = vmax.f32 %v524, 0.0
        %v540 = vmax.f32 %v527, 0.0
        %v541 = vmax.f32 %v529, 0.0
        %v542 = vmax.f32 %v532, 0.0
        %v543 = vmax.f32 %v534, 0.0
        %v544 = vld [vmem:[%s5] sm:$0x1]
        %v545 = vperm.slane %v544, 0
        %v546 = vmul.f32 %v536, %v545
        %v547 = vmul.f32 %v537, %v545
        %v548 = vmul.f32 %v538, %v545
        %v549 = vmul.f32 %v539, %v545
        %v550 = vmul.f32 %v540, %v545
        %v551 = vmul.f32 %v541, %v545
        %v552 = vmul.f32 %v542, %v545
        %v553 = vmul.f32 %v543, %v545
        %vm554 = vcmask 130048
        %v555 = vsel %vm554, %v546, 0.0
        %556 = vadd.xlane.f32.xlu0 %v555
        %v557 = vpop.xlane.xlu0 %556
        %v558 = vsel %vm554, %v547, 0.0
        %559 = vadd.xlane.f32.xlu0 %v558
        %v560 = vpop.xlane.xlu0 %559
        %v561 = vsel %vm554, %v548, 0.0
        %562 = vadd.xlane.f32.xlu0 %v561
        %v563 = vpop.xlane.xlu0 %562
        %v564 = vsel %vm554, %v549, 0.0
        %565 = vadd.xlane.f32.xlu0 %v564
        %v566 = vpop.xlane.xlu0 %565
        %v567 = vsel %vm554, %v550, 0.0
        %568 = vadd.xlane.f32.xlu0 %v567
        %v569 = vpop.xlane.xlu0 %568
        %v570 = vsel %vm554, %v551, 0.0
        %571 = vadd.xlane.f32.xlu0 %v570
        %v572 = vpop.xlane.xlu0 %571
        %v573 = vsel %vm554, %v552, 0.0
        %574 = vadd.xlane.f32.xlu0 %v573
        %v575 = vpop.xlane.xlu0 %574
        %v576 = vsel %vm554, %v553, 0.0
        %577 = vadd.xlane.f32.xlu0 %v576
        %v578 = vpop.xlane.xlu0 %577
        %v579 = vadd.f32 %v557, 0.0
        %v580 = vadd.f32 %v560, 0.0
        %v581 = vadd.f32 %v563, 0.0
        %v582 = vadd.f32 %v566, 0.0
        %v583 = vadd.f32 %v569, 0.0
        %v584 = vadd.f32 %v572, 0.0
        %v585 = vadd.f32 %v575, 0.0
        %v586 = vadd.f32 %v578, 0.0
        %v587 = vld [vmem:[%s6] sm:$0x1]
        %v588 = vperm.slane %v587, 0
        %v589 = vmul.f32 %v536, %v588
        %v590 = vmul.f32 %v537, %v588
        %v591 = vmul.f32 %v538, %v588
        %v592 = vmul.f32 %v539, %v588
        %v593 = vmul.f32 %v540, %v588
        %v594 = vmul.f32 %v541, %v588
        %v595 = vmul.f32 %v542, %v588
        %v596 = vmul.f32 %v543, %v588
        %v597 = vsel %vm554, %v589, 0.0
        %598 = vadd.xlane.f32.xlu0 %v597
        %v599 = vpop.xlane.xlu0 %598
        %v600 = vsel %vm554, %v590, 0.0
        %601 = vadd.xlane.f32.xlu0 %v600
        %v602 = vpop.xlane.xlu0 %601
        %v603 = vsel %vm554, %v591, 0.0
        %604 = vadd.xlane.f32.xlu0 %v603
        %v605 = vpop.xlane.xlu0 %604
        %v606 = vsel %vm554, %v592, 0.0
        %607 = vadd.xlane.f32.xlu0 %v606
        %v608 = vpop.xlane.xlu0 %607
        %v609 = vsel %vm554, %v593, 0.0
        %610 = vadd.xlane.f32.xlu0 %v609
        %v611 = vpop.xlane.xlu0 %610
        %v612 = vsel %vm554, %v594, 0.0
        %613 = vadd.xlane.f32.xlu0 %v612
        %v614 = vpop.xlane.xlu0 %613
        %v615 = vsel %vm554, %v595, 0.0
        %616 = vadd.xlane.f32.xlu0 %v615
        %v617 = vpop.xlane.xlu0 %616
        %v618 = vsel %vm554, %v596, 0.0
        %619 = vadd.xlane.f32.xlu0 %v618
        %v620 = vpop.xlane.xlu0 %619
        %v621 = vadd.f32 %v599, 0.0
        %v622 = vadd.f32 %v602, 0.0
        %v623 = vadd.f32 %v605, 0.0
        %v624 = vadd.f32 %v608, 0.0
        %v625 = vadd.f32 %v611, 0.0
        %v626 = vadd.f32 %v614, 0.0
        %v627 = vadd.f32 %v617, 0.0
        %v628 = vadd.f32 %v620, 0.0
        %v629 = vld [vmem:[%s3] sm:$0xf]
        %v630 = vld [vmem:[%s3 + $0x4] sm:$0xf]
        %v631 = vld [vmem:[%s4 + $0x1] sm:$0x1]
        %v632 = vpack.c.bf16 %v537, %v536
        %v633 = vpack.c.bf16 %v539, %v538
        %v634 = vpack.c.bf16 %v541, %v540
        %v635 = vpack.c.bf16 %v543, %v542
        %v638 = vunpack.c.l.b16 %v629
        %v639 = vunpack.c.l.b16 %v630
        %v640 = vpack.c.b16 %v639, %v638
        %v643 = vsel %vm554, %v632, 0
        %v646 = vsel %vm554, %v633, 0
        %v649 = vsel %vm554, %v634, 0
        %v652 = vsel %vm554, %v635, 0
        %654 = vmatpush.bf16.msra.mxu0 0
        %655 = vmatpush.bf16.msra.mxu0 0
        %656 = vmatpush.bf16.msra.mxu0 0
        %657 = vmatpush.bf16.msra.mxu0 0
        %658 = vmatpush.bf16.msra.mxu0 0
        %659 = vmatpush.bf16.msra.mxu0 0
        %660 = vmatpush.bf16.msra.mxu0 0
        %661 = vmatpush.bf16.msra.mxu0 %v640
        %662 = vmatmul.bf16.gmra.mxu0 %v643
        %v663 = vpop.f32.mrf.mxu0
        %v664 = vadd.f32 0.0, %v663
        %v665 = vpop.f32.mrf.mxu0
        %v666 = vadd.f32 0.0, %v665
        %667 = vmatmul.bf16.gmra.mxu0 %v646
        %v668 = vpop.f32.mrf.mxu0
        %v669 = vadd.f32 0.0, %v668
        %v670 = vpop.f32.mrf.mxu0
        %v671 = vadd.f32 0.0, %v670
        %672 = vmatmul.bf16.gmra.mxu0 %v649
        %v673 = vpop.f32.mrf.mxu0
        %v674 = vadd.f32 0.0, %v673
        %v675 = vpop.f32.mrf.mxu0
        %v676 = vadd.f32 0.0, %v675
        %677 = vmatmul.bf16.gmra.mxu0 %v652
        %v678 = vpop.f32.mrf.mxu0
        %v679 = vadd.f32 0.0, %v678
        %v680 = vpop.f32.mrf.mxu0
        %v681 = vadd.f32 0.0, %v680
        %682 = vdwg.mxu0
        %v683 = vpack.c.bf16 %v666, %v664
        %v684 = vpack.c.bf16 %v671, %v669
        %v685 = vpack.c.bf16 %v676, %v674
        %v686 = vpack.c.bf16 %v681, %v679
        %v687 = vperm.slane %v631, 0
        %688 = vmatpush.bf16.msra.mxu0 0
        %689 = vmatpush.bf16.msra.mxu0 0
        %690 = vmatpush.bf16.msra.mxu0 0
        %691 = vmatpush.bf16.msra.mxu0 0
        %692 = vmatpush.bf16.msra.mxu0 %v686
        %693 = vmatpush.bf16.msra.mxu0 %v685
        %694 = vmatpush.bf16.msra.mxu0 %v684
        %695 = vmatpush.bf16.msra.mxu0 %v683
        %696 = vmatmul.bf16.gmra.mxu0 %v496
        %v697 = vpop.f32.mrf.mxu0
        %v698 = vadd.f32 %v687, %v697
        %v699 = vpop.f32.mrf.mxu0
        %v700 = vadd.f32 %v687, %v699
        %701 = vmatmul.bf16.gmra.mxu0 %v499
        %v702 = vpop.f32.mrf.mxu0
        %v703 = vadd.f32 %v687, %v702
        %v704 = vpop.f32.mrf.mxu0
        %v705 = vadd.f32 %v687, %v704
        %706 = vmatmul.bf16.gmra.mxu0 %v502
        %v707 = vpop.f32.mrf.mxu0
        %v708 = vadd.f32 %v687, %v707
        %v709 = vpop.f32.mrf.mxu0
        %v710 = vadd.f32 %v687, %v709
        %711 = vmatmul.bf16.gmra.mxu0 %v505
        %v712 = vpop.f32.mrf.mxu0
        %v713 = vadd.f32 %v687, %v712
        %v714 = vpop.f32.mrf.mxu0
        %v715 = vadd.f32 %v687, %v714
        %716 = vdwg.mxu0
        %v717 = vmax.f32 %v698, 0.0
        %v718 = vmax.f32 %v700, 0.0
        %v719 = vmax.f32 %v703, 0.0
        %v720 = vmax.f32 %v705, 0.0
        %v721 = vmax.f32 %v708, 0.0
        %v722 = vmax.f32 %v710, 0.0
        %v723 = vmax.f32 %v713, 0.0
        %v724 = vmax.f32 %v715, 0.0
        %v725 = vld [vmem:[%s5 + $0x1] sm:$0x1]
        %v726 = vperm.slane %v725, 0
        %v727 = vmul.f32 %v717, %v726
        %v728 = vmul.f32 %v718, %v726
        %v729 = vmul.f32 %v719, %v726
        %v730 = vmul.f32 %v720, %v726
        %v731 = vmul.f32 %v721, %v726
        %v732 = vmul.f32 %v722, %v726
        %v733 = vmul.f32 %v723, %v726
        %v734 = vmul.f32 %v724, %v726
        %v735 = vsel %vm554, %v727, 0.0
        %736 = vadd.xlane.f32.xlu0 %v735
        %v737 = vpop.xlane.xlu0 %736
        %v738 = vsel %vm554, %v728, 0.0
        %739 = vadd.xlane.f32.xlu0 %v738
        %v740 = vpop.xlane.xlu0 %739
        %v741 = vsel %vm554, %v729, 0.0
        %742 = vadd.xlane.f32.xlu0 %v741
        %v743 = vpop.xlane.xlu0 %742
        %v744 = vsel %vm554, %v730, 0.0
        %745 = vadd.xlane.f32.xlu0 %v744
        %v746 = vpop.xlane.xlu0 %745
        %v747 = vsel %vm554, %v731, 0.0
        %748 = vadd.xlane.f32.xlu0 %v747
        %v749 = vpop.xlane.xlu0 %748
        %v750 = vsel %vm554, %v732, 0.0
        %751 = vadd.xlane.f32.xlu0 %v750
        %v752 = vpop.xlane.xlu0 %751
        %v753 = vsel %vm554, %v733, 0.0
        %754 = vadd.xlane.f32.xlu0 %v753
        %v755 = vpop.xlane.xlu0 %754
        %v756 = vsel %vm554, %v734, 0.0
        %757 = vadd.xlane.f32.xlu0 %v756
        %v758 = vpop.xlane.xlu0 %757
        %v759 = vadd.f32 %v579, %v737
        %v760 = vadd.f32 %v580, %v740
        %v761 = vadd.f32 %v581, %v743
        %v762 = vadd.f32 %v582, %v746
        %v763 = vadd.f32 %v583, %v749
        %v764 = vadd.f32 %v584, %v752
        %v765 = vadd.f32 %v585, %v755
        %v766 = vadd.f32 %v586, %v758
        %v767 = vld [vmem:[%s6 + $0x1] sm:$0x1]
        %v768 = vperm.slane %v767, 0
        %v769 = vmul.f32 %v717, %v768
        %v770 = vmul.f32 %v718, %v768
        %v771 = vmul.f32 %v719, %v768
        %v772 = vmul.f32 %v720, %v768
        %v773 = vmul.f32 %v721, %v768
        %v774 = vmul.f32 %v722, %v768
        %v775 = vmul.f32 %v723, %v768
        %v776 = vmul.f32 %v724, %v768
        %v777 = vsel %vm554, %v769, 0.0
        %778 = vadd.xlane.f32.xlu0 %v777
        %v779 = vpop.xlane.xlu0 %778
        %v780 = vsel %vm554, %v770, 0.0
        %781 = vadd.xlane.f32.xlu0 %v780
        %v782 = vpop.xlane.xlu0 %781
        %v783 = vsel %vm554, %v771, 0.0
        %784 = vadd.xlane.f32.xlu0 %v783
        %v785 = vpop.xlane.xlu0 %784
        %v786 = vsel %vm554, %v772, 0.0
        %787 = vadd.xlane.f32.xlu0 %v786
        %v788 = vpop.xlane.xlu0 %787
        %v789 = vsel %vm554, %v773, 0.0
        %790 = vadd.xlane.f32.xlu0 %v789
        %v791 = vpop.xlane.xlu0 %790
        %v792 = vsel %vm554, %v774, 0.0
        %793 = vadd.xlane.f32.xlu0 %v792
        %v794 = vpop.xlane.xlu0 %793
        %v795 = vsel %vm554, %v775, 0.0
        %796 = vadd.xlane.f32.xlu0 %v795
        %v797 = vpop.xlane.xlu0 %796
        %v798 = vsel %vm554, %v776, 0.0
        %799 = vadd.xlane.f32.xlu0 %v798
        %v800 = vpop.xlane.xlu0 %799
        %v801 = vadd.f32 %v621, %v779
        %v802 = vadd.f32 %v622, %v782
        %v803 = vadd.f32 %v623, %v785
        %v804 = vadd.f32 %v624, %v788
        %v805 = vadd.f32 %v625, %v791
        %v806 = vadd.f32 %v626, %v794
        %v807 = vadd.f32 %v627, %v797
        %v808 = vadd.f32 %v628, %v800
        %s809 = scalar_lea.vmem %s3, 8
        %v810 = vld [vmem:[%s809] sm:$0xf]
        %v811 = vld [vmem:[%s809 + $0x4] sm:$0xf]
        %v812 = vld [vmem:[%s4 + $0x2] sm:$0x1]
        %v813 = vpack.c.bf16 %v718, %v717
        %v814 = vpack.c.bf16 %v720, %v719
        %v815 = vpack.c.bf16 %v722, %v721
        %v816 = vpack.c.bf16 %v724, %v723
        %v819 = vunpack.c.l.b16 %v810
        %v820 = vunpack.c.l.b16 %v811
        %v821 = vpack.c.b16 %v820, %v819
        %v824 = vsel %vm554, %v813, 0
        %v827 = vsel %vm554, %v814, 0
        %v830 = vsel %vm554, %v815, 0
        %v833 = vsel %vm554, %v816, 0
        %835 = vmatpush.bf16.msra.mxu0 0
        %836 = vmatpush.bf16.msra.mxu0 0
        %837 = vmatpush.bf16.msra.mxu0 0
        %838 = vmatpush.bf16.msra.mxu0 0
        %839 = vmatpush.bf16.msra.mxu0 0
        %840 = vmatpush.bf16.msra.mxu0 0
        %841 = vmatpush.bf16.msra.mxu0 0
        %842 = vmatpush.bf16.msra.mxu0 %v821
        %843 = vmatmul.bf16.gmra.mxu0 %v824
        %v844 = vpop.f32.mrf.mxu0
        %v845 = vadd.f32 0.0, %v844
        %v846 = vpop.f32.mrf.mxu0
        %v847 = vadd.f32 0.0, %v846
        %848 = vmatmul.bf16.gmra.mxu0 %v827
        %v849 = vpop.f32.mrf.mxu0
        %v850 = vadd.f32 0.0, %v849
        %v851 = vpop.f32.mrf.mxu0
        %v852 = vadd.f32 0.0, %v851
        %853 = vmatmul.bf16.gmra.mxu0 %v830
        %v854 = vpop.f32.mrf.mxu0
        %v855 = vadd.f32 0.0, %v854
        %v856 = vpop.f32.mrf.mxu0
        %v857 = vadd.f32 0.0, %v856
        %858 = vmatmul.bf16.gmra.mxu0 %v833
        %v859 = vpop.f32.mrf.mxu0
        %v860 = vadd.f32 0.0, %v859
        %v861 = vpop.f32.mrf.mxu0
        %v862 = vadd.f32 0.0, %v861
        %863 = vdwg.mxu0
        %v864 = vpack.c.bf16 %v847, %v845
        %v865 = vpack.c.bf16 %v852, %v850
        %v866 = vpack.c.bf16 %v857, %v855
        %v867 = vpack.c.bf16 %v862, %v860
        %v868 = vperm.slane %v812, 0
        %869 = vmatpush.bf16.msra.mxu0 0
        %870 = vmatpush.bf16.msra.mxu0 0
        %871 = vmatpush.bf16.msra.mxu0 0
        %872 = vmatpush.bf16.msra.mxu0 0
        %873 = vmatpush.bf16.msra.mxu0 %v867
        %874 = vmatpush.bf16.msra.mxu0 %v866
        %875 = vmatpush.bf16.msra.mxu0 %v865
        %876 = vmatpush.bf16.msra.mxu0 %v864
        %877 = vmatmul.bf16.gmra.mxu0 %v496
        %v878 = vpop.f32.mrf.mxu0
        %v879 = vadd.f32 %v868, %v878
        %v880 = vpop.f32.mrf.mxu0
        %v881 = vadd.f32 %v868, %v880
        %882 = vmatmul.bf16.gmra.mxu0 %v499
        %v883 = vpop.f32.mrf.mxu0
        %v884 = vadd.f32 %v868, %v883
        %v885 = vpop.f32.mrf.mxu0
        %v886 = vadd.f32 %v868, %v885
        %887 = vmatmul.bf16.gmra.mxu0 %v502
        %v888 = vpop.f32.mrf.mxu0
        %v889 = vadd.f32 %v868, %v888
        %v890 = vpop.f32.mrf.mxu0
        %v891 = vadd.f32 %v868, %v890
        %892 = vmatmul.bf16.gmra.mxu0 %v505
        %v893 = vpop.f32.mrf.mxu0
        %v894 = vadd.f32 %v868, %v893
        %v895 = vpop.f32.mrf.mxu0
        %v896 = vadd.f32 %v868, %v895
        %897 = vdwg.mxu0
        %v898 = vmax.f32 %v879, 0.0
        %v899 = vmax.f32 %v881, 0.0
        %v900 = vmax.f32 %v884, 0.0
        %v901 = vmax.f32 %v886, 0.0
        %v902 = vmax.f32 %v889, 0.0
        %v903 = vmax.f32 %v891, 0.0
        %v904 = vmax.f32 %v894, 0.0
        %v905 = vmax.f32 %v896, 0.0
        %v906 = vld [vmem:[%s5 + $0x2] sm:$0x1]
        %v907 = vperm.slane %v906, 0
        %v908 = vmul.f32 %v898, %v907
        %v909 = vmul.f32 %v899, %v907
        %v910 = vmul.f32 %v900, %v907
        %v911 = vmul.f32 %v901, %v907
        %v912 = vmul.f32 %v902, %v907
        %v913 = vmul.f32 %v903, %v907
        %v914 = vmul.f32 %v904, %v907
        %v915 = vmul.f32 %v905, %v907
        %v916 = vsel %vm554, %v908, 0.0
        %917 = vadd.xlane.f32.xlu0 %v916
        %v918 = vpop.xlane.xlu0 %917
        %v919 = vsel %vm554, %v909, 0.0
        %920 = vadd.xlane.f32.xlu0 %v919
        %v921 = vpop.xlane.xlu0 %920
        %v922 = vsel %vm554, %v910, 0.0
        %923 = vadd.xlane.f32.xlu0 %v922
        %v924 = vpop.xlane.xlu0 %923
        %v925 = vsel %vm554, %v911, 0.0
        %926 = vadd.xlane.f32.xlu0 %v925
        %v927 = vpop.xlane.xlu0 %926
        %v928 = vsel %vm554, %v912, 0.0
        %929 = vadd.xlane.f32.xlu0 %v928
        %v930 = vpop.xlane.xlu0 %929
        %v931 = vsel %vm554, %v913, 0.0
        %932 = vadd.xlane.f32.xlu0 %v931
        %v933 = vpop.xlane.xlu0 %932
        %v934 = vsel %vm554, %v914, 0.0
        %935 = vadd.xlane.f32.xlu0 %v934
        %v936 = vpop.xlane.xlu0 %935
        %v937 = vsel %vm554, %v915, 0.0
        %938 = vadd.xlane.f32.xlu0 %v937
        %v939 = vpop.xlane.xlu0 %938
        %v940 = vadd.f32 %v759, %v918
        %v941 = vadd.f32 %v760, %v921
        %v942 = vadd.f32 %v761, %v924
        %v943 = vadd.f32 %v762, %v927
        %v944 = vadd.f32 %v763, %v930
        %v945 = vadd.f32 %v764, %v933
        %v946 = vadd.f32 %v765, %v936
        %v947 = vadd.f32 %v766, %v939
        %v948 = vld [vmem:[%s6 + $0x2] sm:$0x1]
        %v949 = vperm.slane %v948, 0
        %v950 = vmul.f32 %v898, %v949
        %v951 = vmul.f32 %v899, %v949
        %v952 = vmul.f32 %v900, %v949
        %v953 = vmul.f32 %v901, %v949
        %v954 = vmul.f32 %v902, %v949
        %v955 = vmul.f32 %v903, %v949
        %v956 = vmul.f32 %v904, %v949
        %v957 = vmul.f32 %v905, %v949
        %v958 = vsel %vm554, %v950, 0.0
        %959 = vadd.xlane.f32.xlu0 %v958
        %v960 = vpop.xlane.xlu0 %959
        %v961 = vsel %vm554, %v951, 0.0
        %962 = vadd.xlane.f32.xlu0 %v961
        %v963 = vpop.xlane.xlu0 %962
        %v964 = vsel %vm554, %v952, 0.0
        %965 = vadd.xlane.f32.xlu0 %v964
        %v966 = vpop.xlane.xlu0 %965
        %v967 = vsel %vm554, %v953, 0.0
        %968 = vadd.xlane.f32.xlu0 %v967
        %v969 = vpop.xlane.xlu0 %968
        %v970 = vsel %vm554, %v954, 0.0
        %971 = vadd.xlane.f32.xlu0 %v970
        %v972 = vpop.xlane.xlu0 %971
        %v973 = vsel %vm554, %v955, 0.0
        %974 = vadd.xlane.f32.xlu0 %v973
        %v975 = vpop.xlane.xlu0 %974
        %v976 = vsel %vm554, %v956, 0.0
        %977 = vadd.xlane.f32.xlu0 %v976
        %v978 = vpop.xlane.xlu0 %977
        %v979 = vsel %vm554, %v957, 0.0
        %980 = vadd.xlane.f32.xlu0 %v979
        %v981 = vpop.xlane.xlu0 %980
        %v982 = vadd.f32 %v801, %v960
        %v983 = vadd.f32 %v802, %v963
        %v984 = vadd.f32 %v803, %v966
        %v985 = vadd.f32 %v804, %v969
        %v986 = vadd.f32 %v805, %v972
        %v987 = vadd.f32 %v806, %v975
        %v988 = vadd.f32 %v807, %v978
        %v989 = vadd.f32 %v808, %v981
        %v990 = vtanh.pop %v940
        %v991 = vtanh.pop %v941
        %v992 = vtanh.pop %v942
        %v993 = vtanh.pop %v943
        %v994 = vtanh.pop %v944
        %v995 = vtanh.pop %v945
        %v996 = vtanh.pop %v946
        %v997 = vtanh.pop %v947
        %v998 = vmul.f32 %v982, %v990
        %v999 = vmul.f32 %v983, %v991
        %v1000 = vmul.f32 %v984, %v992
        %v1001 = vmul.f32 %v985, %v993
        %v1002 = vmul.f32 %v986, %v994
        %v1003 = vmul.f32 %v987, %v995
        %v1004 = vmul.f32 %v988, %v996
        %v1005 = vmul.f32 %v989, %v997
        %1006 = vxpose.xlu0.b32.start [1/16] %v990, 128
        %1007 = vxpose.xlu0.b32.cont [2/16] %v991, 128
        %1008 = vxpose.xlu0.b32.cont [3/16] %v992, 128
        %1009 = vxpose.xlu0.b32.cont [4/16] %v993, 128
        %1010 = vxpose.xlu0.b32.cont [5/16] %v994, 128
        %1011 = vxpose.xlu0.b32.cont [6/16] %v995, 128
        %1012 = vxpose.xlu0.b32.cont [7/16] %v996, 128
        %1013 = vxpose.xlu0.b32.cont [8/16] %v997, 128
        %1014 = vxpose.xlu0.b32.cont [9/16] 0.0, 128
        %1015 = vxpose.xlu0.b32.cont [10/16] 0.0, 128
        %1016 = vxpose.xlu0.b32.cont [11/16] 0.0, 128
        %1017 = vxpose.xlu0.b32.cont [12/16] 0.0, 128
        %1018 = vxpose.xlu0.b32.cont [13/16] 0.0, 128
        %1019 = vxpose.xlu0.b32.cont [14/16] 0.0, 128
        %1020 = vxpose.xlu0.b32.cont [15/16] 0.0, 128
        %1021 = vxpose.xlu0.b32.end [16/16] 0.0, 128
        %v1022 = vpop.trf.xlu0
        %v1023 = vpop.trf.xlu0
        %v1024 = vpop.trf.xlu0
        %v1025 = vpop.trf.xlu0
        %v1026 = vpop.trf.xlu0
        %v1027 = vpop.trf.xlu0
        %v1028 = vpop.trf.xlu0
        %v1029 = vpop.trf.xlu0
        %v1030 = vpop.trf.xlu0
        %v1031 = vpop.trf.xlu0
        %v1032 = vpop.trf.xlu0
        %v1033 = vpop.trf.xlu0
        %v1034 = vpop.trf.xlu0
        %v1035 = vpop.trf.xlu0
        %v1036 = vpop.trf.xlu0
        %v1037 = vpop.trf.xlu0
        %v1038 = vlaneseq
        %v1039 = vshrl.u32 %v1038, 7
        %v1040 = vadd.s32 %v1039, 8
        %v1041 = vadd.s32 %v1039, 16
        %v1042 = vadd.s32 %v1039, 24
        %v1043 = vadd.s32 %v1039, 32
        %v1044 = vadd.s32 %v1039, 40
        %v1045 = vadd.s32 %v1039, 48
        %v1046 = vadd.s32 %v1039, 56
        %v1047 = vlaneseq
        %v1048 = vand.u32 %v1047, 127
        %v1049 = vperm.slane %v1022, 0
        %vm1050 = vcmp.gt.f32.partialorder %v1049, %v990
        %vm1051 = vcmp.gt.f32.partialorder %v1049, %v991
        %vm1052 = vcmp.gt.f32.partialorder %v1049, %v992
        %vm1053 = vcmp.gt.f32.partialorder %v1049, %v993
        %vm1054 = vcmp.gt.f32.partialorder %v1049, %v994
        %vm1055 = vcmp.gt.f32.partialorder %v1049, %v995
        %vm1056 = vcmp.gt.f32.partialorder %v1049, %v996
        %vm1057 = vcmp.gt.f32.partialorder %v1049, %v997
        %vm1058 = vcmp.eq.f32.partialorder %v1049, %v990
        %vm1059 = vcmp.eq.f32.partialorder %v1049, %v991
        %vm1060 = vcmp.eq.f32.partialorder %v1049, %v992
        %vm1061 = vcmp.eq.f32.partialorder %v1049, %v993
        %vm1062 = vcmp.eq.f32.partialorder %v1049, %v994
        %vm1063 = vcmp.eq.f32.partialorder %v1049, %v995
        %vm1064 = vcmp.eq.f32.partialorder %v1049, %v996
        %vm1065 = vcmp.eq.f32.partialorder %v1049, %v997
        %vm1066 = vcmp.lt.s32.totalorder %v1048, %v1039
        %vm1067 = vcmp.lt.s32.totalorder %v1048, %v1040
        %vm1068 = vcmp.lt.s32.totalorder %v1048, %v1041
        %vm1069 = vcmp.lt.s32.totalorder %v1048, %v1042
        %vm1070 = vcmp.lt.s32.totalorder %v1048, %v1043
        %vm1071 = vcmp.lt.s32.totalorder %v1048, %v1044
        %vm1072 = vcmp.lt.s32.totalorder %v1048, %v1045
        %vm1073 = vcmp.lt.s32.totalorder %v1048, %v1046
        %vm1074 = vmand %vm1058, %vm1066
        %vm1075 = vmand %vm1059, %vm1067
        %vm1076 = vmand %vm1060, %vm1068
        %vm1077 = vmand %vm1061, %vm1069
        %vm1078 = vmand %vm1062, %vm1070
        %vm1079 = vmand %vm1063, %vm1071
        %vm1080 = vmand %vm1064, %vm1072
        %vm1081 = vmand %vm1065, %vm1073
        %vm1082 = vmor %vm1050, %vm1074
        %vm1083 = vmor %vm1051, %vm1075
        %vm1084 = vmor %vm1052, %vm1076
        %vm1085 = vmor %vm1053, %vm1077
        %vm1086 = vmor %vm1054, %vm1078
        %vm1087 = vmor %vm1055, %vm1079
        %vm1088 = vmor %vm1056, %vm1080
        %vm1089 = vmor %vm1057, %vm1081
        %v1090 = vsel %vm1082, 1, 0
        %v1091 = vsel %vm1083, 1, 0
        %v1092 = vsel %vm1084, 1, 0
        %v1093 = vsel %vm1085, 1, 0
        %v1094 = vsel %vm1086, 1, 0
        %v1095 = vsel %vm1087, 1, 0
        %v1096 = vsel %vm1088, 1, 0
        %v1097 = vsel %vm1089, 1, 0
        %v1098 = vcvt.s32.f32 %v1090
        %v1099 = vcvt.s32.f32 %v1091
        %v1100 = vcvt.s32.f32 %v1092
        %v1101 = vcvt.s32.f32 %v1093
        %v1102 = vcvt.s32.f32 %v1094
        %v1103 = vcvt.s32.f32 %v1095
        %v1104 = vcvt.s32.f32 %v1096
        %v1105 = vcvt.s32.f32 %v1097
        %v1106 = vsel %vm494, %v1098, 0.0
        %1107 = vadd.xlane.f32.xlu0 %v1106
        %v1108 = vpop.xlane.xlu0 %1107
        %v1109 = vsel %vm494, %v1099, 0.0
        %1110 = vadd.xlane.f32.xlu0 %v1109
        %v1111 = vpop.xlane.xlu0 %1110
        %v1112 = vsel %vm494, %v1100, 0.0
        %1113 = vadd.xlane.f32.xlu0 %v1112
        %v1114 = vpop.xlane.xlu0 %1113
        %v1115 = vsel %vm494, %v1101, 0.0
        %1116 = vadd.xlane.f32.xlu0 %v1115
        %v1117 = vpop.xlane.xlu0 %1116
        %v1118 = vsel %vm494, %v1102, 0.0
        %1119 = vadd.xlane.f32.xlu0 %v1118
        %v1120 = vpop.xlane.xlu0 %1119
        %v1121 = vsel %vm494, %v1103, 0.0
        %1122 = vadd.xlane.f32.xlu0 %v1121
        %v1123 = vpop.xlane.xlu0 %1122
        %v1124 = vsel %vm494, %v1104, 0.0
        %1125 = vadd.xlane.f32.xlu0 %v1124
        %v1126 = vpop.xlane.xlu0 %1125
        %v1127 = vsel %vm494, %v1105, 0.0
        %1128 = vadd.xlane.f32.xlu0 %v1127
        %v1129 = vpop.xlane.xlu0 %1128
        %v1130 = vcvt.s32.f32 %v1048
        %vm1131 = vcmp.eq.f32.partialorder %v1108, %v1130
        %vm1132 = vcmp.eq.f32.partialorder %v1111, %v1130
        %vm1133 = vcmp.eq.f32.partialorder %v1114, %v1130
        %vm1134 = vcmp.eq.f32.partialorder %v1117, %v1130
        %vm1135 = vcmp.eq.f32.partialorder %v1120, %v1130
        %vm1136 = vcmp.eq.f32.partialorder %v1123, %v1130
        %vm1137 = vcmp.eq.f32.partialorder %v1126, %v1130
        %vm1138 = vcmp.eq.f32.partialorder %v1129, %v1130
        %v1139 = vsel %vm1131, 1, 0
        %v1140 = vsel %vm1132, 1, 0
        %v1141 = vsel %vm1133, 1, 0
        %v1142 = vsel %vm1134, 1, 0
        %v1143 = vsel %vm1135, 1, 0
        %v1144 = vsel %vm1136, 1, 0
        %v1145 = vsel %vm1137, 1, 0
        %v1146 = vsel %vm1138, 1, 0
        %v1147 = vcvt.s32.f32 %v1139
        %v1148 = vcvt.s32.f32 %v1140
        %v1149 = vcvt.s32.f32 %v1141
        %v1150 = vcvt.s32.f32 %v1142
        %v1151 = vcvt.s32.f32 %v1143
        %v1152 = vcvt.s32.f32 %v1144
        %v1153 = vcvt.s32.f32 %v1145
        %v1154 = vcvt.s32.f32 %v1146
        %v1155 = vmul.f32 %v1147, %v998
        %v1156 = vmul.f32 %v1148, %v999
        %v1157 = vmul.f32 %v1149, %v1000
        %v1158 = vmul.f32 %v1150, %v1001
        %v1159 = vmul.f32 %v1151, %v1002
        %v1160 = vmul.f32 %v1152, %v1003
        %v1161 = vmul.f32 %v1153, %v1004
        %v1162 = vmul.f32 %v1154, %v1005
        %vm1163 = vcmask 261120
        %v1164 = vsel %vm1163, %v1155, 0.0
        %v1165 = vsel %vm1163, %v1156, 0.0
        %v1166 = vadd.f32 %v1164, %v1165
        %v1167 = vsel %vm1163, %v1157, 0.0
        %v1168 = vadd.f32 %v1166, %v1167
        %v1169 = vsel %vm1163, %v1158, 0.0
        %v1170 = vadd.f32 %v1168, %v1169
        %v1171 = vsel %vm1163, %v1159, 0.0
        %v1172 = vadd.f32 %v1170, %v1171
        %v1173 = vsel %vm1163, %v1160, 0.0
        %v1174 = vadd.f32 %v1172, %v1173
        %v1175 = vsel %vm1163, %v1161, 0.0
        %v1176 = vadd.f32 %v1174, %v1175
        %v1177 = vsel %vm1163, %v1162, 0.0
        %v1178 = vadd.f32 %v1176, %v1177
        %v1179 = vrot.slane %v1178, 4
        %v1180 = vadd.f32 %v1178, %v1179
        %v1181 = vrot.slane %v1180, 2
        %v1182 = vadd.f32 %v1180, %v1181
        %v1183 = vrot.slane %v1182, 1
        %v1184 = vadd.f32 %v1182, %v1183
        %v1185 = vld [vmem:[%s7] sm:$0xff]
        %v1186 = vld [vmem:[%s7 + $0x8] sm:$0xff]
        %v1187 = vld [vmem:[%s7 + $0x10] sm:$0xff]
        %v1188 = vld [vmem:[%s7 + $0x18] sm:$0xff]
        %v1189 = vld [vmem:[%s8] sm:$0x1]
        %v1191 = vsel %vm1163, %v1184, 0
        %1193 = vmatpush.msra.mxu0 0.0
        %1194 = vmatpush.msra.mxu0 0.0
        %1195 = vmatpush.msra.mxu0 0.0
        %1196 = vmatpush.msra.mxu0 0.0
        %1197 = vmatpush.msra.mxu0 0.0
        %1198 = vmatpush.msra.mxu0 0.0
        %1199 = vmatpush.msra.mxu0 0.0
        %1200 = vmatpush.msra.mxu0 0.0
        %1201 = vmatpush.msra.mxu0 0.0
        %1202 = vmatpush.msra.mxu0 0.0
        %1203 = vmatpush.msra.mxu0 0.0
        %1204 = vmatpush.msra.mxu0 0.0
        %1205 = vmatpush.msra.mxu0 %v1188
        %1206 = vmatpush.msra.mxu0 %v1187
        %1207 = vmatpush.msra.mxu0 %v1186
        %1208 = vmatpush.msra.mxu0 %v1185
        %1209 = vmatmul.f32.gmra.mxu0 %v1191
        %v1210 = vpop.f32.mrf.mxu0
        %v1211 = vadd.f32 %v1189, %v1210
        %1212 = vdwg.mxu0
        %v1213 = vmax.f32 %v1211, 0.0
        %v1214 = vld [vmem:[%s9] sm:$0xff]
        %v1215 = vld [vmem:[%s9 + $0x8] sm:$0xff]
        %v1216 = vld [vmem:[%s9 + $0x10] sm:$0xff]
        %v1217 = vld [vmem:[%s9 + $0x18] sm:$0xff]
        %v1218 = vld [vmem:[%s10] sm:$0x1]
        %v1220 = vsel %vm1163, %v1213, 0
        %1222 = vmatpush.msra.mxu0 0.0
        %1223 = vmatpush.msra.mxu0 0.0
        %1224 = vmatpush.msra.mxu0 0.0
        %1225 = vmatpush.msra.mxu0 0.0
        %1226 = vmatpush.msra.mxu0 0.0
        %1227 = vmatpush.msra.mxu0 0.0
        %1228 = vmatpush.msra.mxu0 0.0
        %1229 = vmatpush.msra.mxu0 0.0
        %1230 = vmatpush.msra.mxu0 0.0
        %1231 = vmatpush.msra.mxu0 0.0
        %1232 = vmatpush.msra.mxu0 0.0
        %1233 = vmatpush.msra.mxu0 0.0
        %1234 = vmatpush.msra.mxu0 %v1217
        %1235 = vmatpush.msra.mxu0 %v1216
        %1236 = vmatpush.msra.mxu0 %v1215
        %1237 = vmatpush.msra.mxu0 %v1214
        %1238 = vmatmul.f32.gmra.mxu0 %v1220
        %v1239 = vpop.f32.mrf.mxu0
        %v1240 = vadd.f32 %v1218, %v1239
        %1241 = vdwg.mxu0
        %vm1242 = vcmask 24576
        %v1243 = vsel %vm1242, %v1240, -inf
        %1244 = vmax.xlane.f32.xlu0 %v1243
        %v1245 = vpop.xlane.xlu0 %1244
        %v1246 = vsub.f32 %v1240, %v1245
        %v1247 = vmul.f32 %v1246, 1.442695
        %v1248 = vpow.pop %v1247
        %v1249 = vsel %vm1242, %v1248, 0.0
        %1250 = vadd.xlane.f32.xlu0 %v1249
        %v1251 = vpop.xlane.xlu0 %1250
        %v1252 = vlog2.pop %v1251
        %v1253 = vmul.f32 %v1252, 0.6931472
        %v1254 = vsub.f32 %v1246, %v1253
        %1255 = vst.msk [vmem:[%s378] sm:$0x1] %vm1242, %v1254
        %s1256 = sand.u32 %s269, 1
        %s1257 = scalar_lea.sflag [#allocation3], %s1256
        %s1258 = sand.u32 %s269, 1
        %s1259 = scalar_lea.vmem [#allocation2], %s1258
        // Predicated region
        $region65: #{gcn_model_w_topk_forward.1} parent=63 // pred_check
          %p1260 = pneg %p279
        $region66: #{gcn_model_w_topk_forward.1} parent=63 // pred_check_branch
          %1262 = sbr.rel (%p1260) target = $region68
        $region67: #{gcn_model_w_topk_forward.1} parent=63 // pred_region
          %1264 = vsyncadd %s1257, 0
          %s1265 = scalar_lea.hbm %s11, %s25
          %s1267 = sshll.u32 %s1259, 4
          %s1268 = int_to_ptr.vmem [resolvable:$true] %s1267
          %s1269 = sshll.u32 %s1265, 4
          %s1270 = int_to_ptr.hbm [resolvable:$true] %s1269
          %1272 = dma.vmem_to_hbm [thread:$0]  %s1268, 16, %s1270, %s1257
        $region68: #{gcn_model_w_topk_forward.1} parent=63 // pred_fallthru
          _
      $region64: #{gcn_model_w_topk_forward.1} parent=5 // pred_fallthru
        _
      %p1273 = scmp.le.s32.totalorder 2, %s20
      // Predicated region
      $region69: #{gcn_model_w_topk_forward.1} parent=5 // pred_check
        %p1274 = pneg %p1273
      $region70: #{gcn_model_w_topk_forward.1} parent=5 // pred_check_branch
        %1276 = sbr.rel (%p1274) target = $region72
      $region71: #{gcn_model_w_topk_forward.1} parent=5 // pred_region
        %s1277 = ssub.s32 %s20, 2
        // Predicated region
        $region73: #{gcn_model_w_topk_forward.1} parent=71 // pred_check
          %p1278 = pneg %p285
        $region74: #{gcn_model_w_topk_forward.1} parent=71 // pred_check_branch
          %1280 = sbr.rel (%p1278) target = $region76
        $region75: #{gcn_model_w_topk_forward.1} parent=71 // pred_region
          %s1281 = sand.u32 %s270, 1
          %s1282 = scalar_lea.sflag [#allocation3], %s1281
          %s1283 = sand.u32 %s270, 1
          %s1284 = scalar_lea.vmem [#allocation2], %s1283
          %1286 = dma.done %s1282, 16
        $region76: #{gcn_model_w_topk_forward.1} parent=71 // pred_fallthru
          _
      $region72: #{gcn_model_w_topk_forward.1} parent=5 // pred_fallthru
        _
    $region6: #{gcn_model_w_topk_forward.1} parent=1 // loop_footer
      %s24 = sadd.s32 1, %s20
    $region7: #{gcn_model_w_topk_forward.1} parent=1 // loop_footer_branch
      %19 = sbr.rel target = $region3
    $region8: #{gcn_model_w_topk_forward.1} parent=1 // loop_exit
      _
    %1287 = vsyncpa [#allocation3], 1
    %s1288 = scalar_lea.sflag [#allocation3], 1
    %1289 = vsyncpa %s1288, 1

</llo_original>
